<compile_context>
chip_gen: v5e
topology: v5e:2x2
jax: 0.10.0
libtpu: 0.0.40
codegen_flags: <defaults>
</compile_context>

<pallas_src>
import functools
import math

import jax
import jax.numpy as jnp
from jax import lax
from jax.experimental import pallas as pl
from jax.experimental.pallas import tpu as pltpu

TEMPERATURE = 0.5
BASE_TEMPERATURE = 0.07          # unused in the forward math (matches PyTorch code)
SCALE_BY_TEMPERATURE = True
LANE = 128


# --------------------------------------------------------------------------- #
# Kernel
# --------------------------------------------------------------------------- #
def _supcon_kernel(frow_ref, fcolT_ref, dev_r_ref, dev_c_ref, out_ref,
                   denom_acc, s1_acc, s2_acc, npos_acc,
                   *, n_pad, use_bf16_exp):
    j = pl.program_id(1)

    @pl.when(j == 0)
    def _():
        denom_acc[...] = jnp.zeros_like(denom_acc)
        s1_acc[...] = jnp.zeros_like(s1_acc)
        s2_acc[...] = jnp.zeros_like(s2_acc)
        npos_acc[...] = jnp.zeros_like(npos_acc)

    # anchor_dot_contrast / T for this (row tile, column tile):
    # (tile_b, 2D) bf16 x (2D, tile_c) bf16, f32 accumulation on the MXU.
    adc = jnp.dot(frow_ref[...], fcolT_ref[...],
                  preferred_element_type=jnp.float32)           # (T, C) f32

    dev_b = jnp.abs(dev_r_ref[...] - dev_c_ref[...])            # (T, C) broadcast
    mask = jnp.where(dev_b <= 1.0, 1.0, 0.0)                    # positives (incl. diag)
    sm = pl.reciprocal(1.0 + dev_b, approx=True) * mask         # sim_coeff * positives

    if use_bf16_exp:
        # bf16 EUP path (v6e/v7x): ~2x exp throughput, half the temporary.
        exp_adc = jnp.exp(adc.astype(jnp.bfloat16)).astype(jnp.float32)
    else:
        exp_adc = jnp.exp(adc)

    denom_acc[...] += jnp.sum(exp_adc, axis=1, keepdims=True)   # (T, 1)
    s1_acc[...] += jnp.sum(adc * sm, axis=1, keepdims=True)
    s2_acc[...] += jnp.sum(sm, axis=1, keepdims=True)
    npos_acc[...] += jnp.sum(mask, axis=1, keepdims=True)

    @pl.when(j == pl.num_programs(1) - 1)
    def _():
        diag_adc = 2.0 / TEMPERATURE                 # adc_ii for unit-norm features
        # Remove the diagonal term and the zero-padded columns (exp(0) == 1 each).
        denom = denom_acc[...] - (math.exp(diag_adc) + float(n_pad))
        num_pos = npos_acc[...] - 1.0                # diagonal is always "positive"
        log_d = jnp.log(denom + 1e-6)
        # sum_{j != i, pos} (adc - log_d) * sim  ==  (s1 - 2/T) - log_d * (s2 - 1)
        row_sum = (s1_acc[...] - diag_adc) - log_d * (s2_acc[...] - 1.0)
        loss = -(row_sum / jnp.maximum(num_pos, 1.0))
        if SCALE_BY_TEMPERATURE:
            loss = loss * TEMPERATURE

        # Lane-dense output slab: column 0 = loss, column 1 = num_pos, rest 0.
        lane = lax.broadcasted_iota(jnp.int32, out_ref.shape, 1)
        out_ref[...] = jnp.where(lane == 0, loss,
                                 jnp.where(lane == 1, num_pos, 0.0))


# --------------------------------------------------------------------------- #
# Wrapper
# --------------------------------------------------------------------------- #
def _round_up(x, m):
    return ((x + m - 1) // m) * m


def _pick_tiles(b_pad):
    """Row tile: multiple of 8, capped at 128 (MXU M); >=2 row tiles when possible.
    Column tile: multiple of 128 (lane-aligned) dividing the padded batch."""
    tile_b = min(128, b_pad)
    if b_pad // tile_b < 2 and b_pad // 2 >= 8:
        tile_b = b_pad // 2          # give both TensorCores work on small batches
    tile_c = b_pad
    for c in (512, 256, 128):
        if b_pad % c == 0:
            tile_c = c
            break
    return tile_b, tile_c


def _use_bf16_exp():
    """bf16 EUP exists on v6e/v7x; on v5e and older it only adds convert ops."""
    try:
        kind = jax.devices()[0].device_kind.lower()
    except Exception:
        return False
    return not any(v in kind for v in ("v2", "v3", "v4", "v5"))


@functools.partial(jax.jit, static_argnames=("tile_b", "tile_c", "use_bf16_exp"))
def _supcon_forward(x1, x2, dev_score, *, tile_b, tile_c, use_bf16_exp):
    batch, d = x1.shape
    b_pad = _round_up(batch, LANE)
    n_pad = b_pad - batch
    two_d = 2 * d
    inv_sqrt_t = (1.0 / TEMPERATURE) ** 0.5

    x1 = x1.astype(jnp.float32)
    x2 = x2.astype(jnp.float32)

    # F.normalize(p=2, dim=1) on both halves, concat, fold in 1/sqrt(T) so the
    # matmul directly yields anchor_dot_contrast / T.  Done ONCE in the wrapper.
    i1 = lax.rsqrt(jnp.maximum(jnp.sum(x1 * x1, axis=1, keepdims=True), 1e-24))
    i2 = lax.rsqrt(jnp.maximum(jnp.sum(x2 * x2, axis=1, keepdims=True), 1e-24))
    feats = jnp.concatenate([x1 * (i1 * inv_sqrt_t), x2 * (i2 * inv_sqrt_t)],
                            axis=1)                                  # (B, 2D) f32
    feats = jnp.pad(feats, ((0, n_pad), (0, 0)))                     # zero pad rows
    feats_bf = feats.astype(jnp.bfloat16)                            # (B_pad, 2D)
    feats_t = feats_bf.T                                             # (2D, B_pad) RHS

    # Clip once here (PyTorch's where(>5)/where(<-5)); padded entries = 1e4 so
    # |dev diff| > 1 against every real row -> never counted as a positive.
    dev = jnp.clip(dev_score.reshape(-1).astype(jnp.float32), -5.0, 5.0)
    dev = jnp.pad(dev, (0, n_pad), constant_values=1e4)
    dev_r = dev.reshape(1, b_pad)
    dev_c = dev.reshape(b_pad, 1)

    grid = (b_pad // tile_b, b_pad // tile_c)
    kernel = functools.partial(_supcon_kernel, n_pad=n_pad,
                               use_bf16_exp=use_bf16_exp)

    out = pl.pallas_call(
        kernel,
        out_shape=jax.ShapeDtypeStruct((b_pad, LANE), jnp.float32),
        grid_spec=pltpu.PrefetchScalarGridSpec(
            num_scalar_prefetch=0,
            grid=grid,
            in_specs=[
                # TODO(synk): mark the j-invariant blocks pipeline_mode=pl.Buffered(1)
                # on v7x to avoid double-buffering never-changing operands.
                pl.BlockSpec((tile_b, two_d), lambda i, j: (i, 0)),  # anchor rows (bf16)
                pl.BlockSpec((two_d, tile_c), lambda i, j: (0, j)),  # contrast cols (bf16, pre-transposed)
                pl.BlockSpec((1, tile_c), lambda i, j: (0, j)),      # dev_score row slice
                pl.BlockSpec((tile_b, 1), lambda i, j: (i, 0)),      # dev_score col slice
            ],
            out_specs=pl.BlockSpec((tile_b, LANE), lambda i, j: (i, 0)),
            scratch_shapes=[pltpu.VMEM((tile_b, 1), jnp.float32)] * 4,
        ),
        compiler_params=pltpu.CompilerParams(
            dimension_semantics=("parallel", "arbitrary"),
        ),
    )(feats_bf, feats_t, dev_r, dev_c)

    return out[:batch, 0], out[:batch, 1]


def supcon_loss_per_row(x1, x2, dev_score, *, tile_b=None, tile_c=None):
    """Jit-friendly forward: returns (loss_per_row, num_positives_per_row).
    Rows with num_positives == 0 carry an (unused) placeholder loss."""
    batch = x1.shape[0]
    b_pad = _round_up(batch, LANE)
    auto_b, auto_c = _pick_tiles(b_pad)
    tile_b = auto_b if tile_b is None else tile_b
    tile_c = auto_c if tile_c is None else tile_c
    assert b_pad % tile_b == 0 and (tile_b % 8 == 0 or tile_b == b_pad)
    assert b_pad % tile_c == 0 and (tile_c % 128 == 0 or tile_c == b_pad)
    return _supcon_forward(x1, x2, dev_score, tile_b=tile_b, tile_c=tile_c,
                           use_bf16_exp=_use_bf16_exp())


def supcon_loss(x1, x2, dev_score, *, tile_b=None, tile_c=None):
    """Strict parity with the PyTorch module: 1-D loss over rows with >0 positives.
    (Dynamic output shape => done eagerly outside the jitted kernel path.)"""
    loss, num_pos = supcon_loss_per_row(x1, x2, dev_score,
                                        tile_b=tile_b, tile_c=tile_c)
    # TODO(synk): the PyTorch host-side `if torch.any(torch.isnan(...)): raise`
    # is dropped on purpose (it forces a device->host sync every call); use
    # jax.experimental.checkify / pl.debug_check if NaN trapping is required.
    return loss[num_pos > 0]


# --------------------------------------------------------------------------- #
# Pure-JAX f32 mirror of the PyTorch forward (per-row loss, num_pos)
# --------------------------------------------------------------------------- #
def _reference(x1, x2, dev_score):
    eps = 1e-12
    x1n = x1 / jnp.maximum(jnp.linalg.norm(x1, axis=1, keepdims=True), eps)
    x2n = x2 / jnp.maximum(jnp.linalg.norm(x2, axis=1, keepdims=True), eps)
    feats = jnp.concatenate([x1n, x2n], axis=1)
    batch = feats.shape[0]
    ds = jnp.clip(dev_score, -5.0, 5.0).reshape(1, -1)
    dev_b = jnp.abs(ds - ds.T)
    mask = (dev_b <= 1.0).astype(jnp.float32)
    adc = feats @ feats.T / TEMPERATURE
    logits = adc - jnp.max(adc, axis=1, keepdims=True)
    exp_logits = jnp.exp(logits)
    eye = jnp.eye(batch, dtype=jnp.float32)
    pos = mask * (1.0 - eye)
    neg = 1.0 - mask
    sim = 1.0 / (1.0 + dev_b)
    npos = jnp.sum(pos, axis=1)
    denom = (jnp.sum(exp_logits * neg, axis=1, keepdims=True)
             + jnp.sum(exp_logits * pos, axis=1, keepdims=True))
    logp = (logits - jnp.log(denom + 1e-6)) * sim
    row = jnp.sum(logp * pos, axis=1)
    loss = -(row / jnp.maximum(npos, 1.0))
    if SCALE_BY_TEMPERATURE:
        loss = loss * TEMPERATURE
    return loss, npos


if __name__ == "__main__":
    key = jax.random.PRNGKey(0)
    k1, k2, k3 = jax.random.split(key, 3)

    # batch not a multiple of 128 -> exercises the padding path; grid = (4, 2)
    # with the explicit tiles below (row-parallel + column accumulation).
    B, D = 200, 32
    x1 = jax.random.normal(k1, (B, D), dtype=jnp.float32)
    x2 = jax.random.normal(k2, (B, D), dtype=jnp.float32)
    dev_score = jax.random.uniform(k3, (B,), dtype=jnp.float32,
                                   minval=-2.0, maxval=2.0)

    loss_row, num_pos = supcon_loss_per_row(x1, x2, dev_score,
                                            tile_b=64, tile_c=128)
    jax.block_until_ready((loss_row, num_pos))

    # Correctness vs. an f32 pure-JAX mirror of the PyTorch forward.
    ref_loss, ref_npos = _reference(x1, x2, dev_score)
    assert jnp.allclose(num_pos, ref_npos), "num_positives mismatch"
    # bf16 MXU operands / bf16 exp / approx reciprocal => loose tolerance vs f32.
    assert jnp.allclose(loss_row, ref_loss, rtol=5e-2, atol=5e-2), (
        float(jnp.max(jnp.abs(loss_row - ref_loss))))

    # Auto-tiling path + strict-parity dynamic row filter (outside jit).
    loss = supcon_loss(x1, x2, dev_score)
    jax.block_until_ready(loss)
    assert loss.shape[0] == int(jnp.sum(ref_npos > 0))

    print("KERNEL_OK")
</pallas_src>

<mosaic_0001>
module attributes {stable_mosaic.version = 11 : i64} {
  func.func @_supcon_kernel(%arg0: i32, %arg1: i32, %arg2: memref<64x64xbf16, #tpu.memory_space<vmem>>, %arg3: memref<64x128xbf16, #tpu.memory_space<vmem>>, %arg4: memref<1x128xf32, #tpu.memory_space<vmem>>, %arg5: memref<64x1xf32, #tpu.memory_space<vmem>>, %arg6: memref<64x128xf32, #tpu.memory_space<vmem>>, %arg7: memref<64x1xf32, #tpu.memory_space<vmem>>, %arg8: memref<64x1xf32, #tpu.memory_space<vmem>>, %arg9: memref<64x1xf32, #tpu.memory_space<vmem>>, %arg10: memref<64x1xf32, #tpu.memory_space<vmem>>) attributes {dimension_semantics = [#tpu.dimension_semantics<parallel>, #tpu.dimension_semantics<arbitrary>], iteration_bounds = array<i64: 4, 2>, scalar_prefetch = 0 : i64, scratch_operands = 4 : i64, tpu.core_type = #tpu.core_type<tc>, window_params = [{transform_indices = @transform_0, window_bounds = array<i64: 64, 64>}, {transform_indices = @transform_1, window_bounds = array<i64: 64, 128>}, {transform_indices = @transform_2, window_bounds = array<i64: 1, 128>}, {transform_indices = @transform_3, window_bounds = array<i64: 64, 1>}, {transform_indices = @transform_4, window_bounds = array<i64: 64, 128>}]} {
    %c0_i32 = arith.constant 0 : i32
    %0 = arith.cmpi eq, %arg1, %c0_i32 : i32
    %1 = arith.extui %0 : i1 to i32
    %c0_i32_0 = arith.constant 0 : i32
    %2 = arith.cmpi ne, %1, %c0_i32_0 : i32
    scf.if %2 {
      %cst_33 = arith.constant 0.000000e+00 : f32
      %48 = vector.broadcast %cst_33 : f32 to vector<64x1xf32>
      %c0_34 = arith.constant 0 : index
      %c0_35 = arith.constant 0 : index
      %49 = vector.load %arg7[%c0_34, %c0_35] : memref<64x1xf32, #tpu.memory_space<vmem>>, vector<64x1xf32>
      tpu.vector_store %arg7[%c0_34, %c0_35], %48 {strides = array<i32>} : memref<64x1xf32, #tpu.memory_space<vmem>>, vector<64x1xf32>,
      %cst_36 = arith.constant 0.000000e+00 : f32
      %50 = vector.broadcast %cst_36 : f32 to vector<64x1xf32>
      %c0_37 = arith.constant 0 : index
      %c0_38 = arith.constant 0 : index
      %51 = vector.load %arg8[%c0_37, %c0_38] : memref<64x1xf32, #tpu.memory_space<vmem>>, vector<64x1xf32>
      tpu.vector_store %arg8[%c0_37, %c0_38], %50 {strides = array<i32>} : memref<64x1xf32, #tpu.memory_space<vmem>>, vector<64x1xf32>,
      %cst_39 = arith.constant 0.000000e+00 : f32
      %52 = vector.broadcast %cst_39 : f32 to vector<64x1xf32>
      %c0_40 = arith.constant 0 : index
      %c0_41 = arith.constant 0 : index
      %53 = vector.load %arg9[%c0_40, %c0_41] : memref<64x1xf32, #tpu.memory_space<vmem>>, vector<64x1xf32>
      tpu.vector_store %arg9[%c0_40, %c0_41], %52 {strides = array<i32>} : memref<64x1xf32, #tpu.memory_space<vmem>>, vector<64x1xf32>,
      %cst_42 = arith.constant 0.000000e+00 : f32
      %54 = vector.broadcast %cst_42 : f32 to vector<64x1xf32>
      %c0_43 = arith.constant 0 : index
      %c0_44 = arith.constant 0 : index
      %55 = vector.load %arg10[%c0_43, %c0_44] : memref<64x1xf32, #tpu.memory_space<vmem>>, vector<64x1xf32>
      tpu.vector_store %arg10[%c0_43, %c0_44], %54 {strides = array<i32>} : memref<64x1xf32, #tpu.memory_space<vmem>>, vector<64x1xf32>,
    } else {
    }
    %c0 = arith.constant 0 : index
    %c0_1 = arith.constant 0 : index
    %3 = vector.load %arg2[%c0, %c0_1] : memref<64x64xbf16, #tpu.memory_space<vmem>>, vector<64x64xbf16>
    %c0_2 = arith.constant 0 : index
    %c0_3 = arith.constant 0 : index
    %4 = vector.load %arg3[%c0_2, %c0_3] : memref<64x128xbf16, #tpu.memory_space<vmem>>, vector<64x128xbf16>
    %cst = arith.constant dense<0.000000e+00> : vector<64x128xf32>
    %5 = tpu.matmul %3, %4, %cst {dimension_numbers = #tpu.dot_dimension_numbers<[1], [0], [0], [1], [0, 0, 1, 1], [], []>} : vector<64x64xbf16>, vector<64x128xbf16>, vector<64x128xf32> -> vector<64x128xf32>
    %c0_4 = arith.constant 0 : index
    %c0_5 = arith.constant 0 : index
    %6 = vector.load %arg4[%c0_4, %c0_5] : memref<1x128xf32, #tpu.memory_space<vmem>>, vector<1x128xf32>
    %c0_6 = arith.constant 0 : index
    %c0_7 = arith.constant 0 : index
    %7 = vector.load %arg5[%c0_6, %c0_7] : memref<64x1xf32, #tpu.memory_space<vmem>>, vector<64x1xf32>
    %8 = vector.broadcast %6 : vector<1x128xf32> to vector<64x128xf32>
    %9 = vector.broadcast %7 : vector<64x1xf32> to vector<64x128xf32>
    %10 = arith.subf %8, %9 : vector<64x128xf32>
    %11 = math.absf %10 : vector<64x128xf32>
    %cst_8 = arith.constant 1.000000e+00 : f32
    %12 = vector.broadcast %cst_8 : f32 to vector<64x128xf32>
    %13 = arith.cmpf ole, %11, %12 : vector<64x128xf32>
    %cst_9 = arith.constant 1.000000e+00 : f32
    %cst_10 = arith.constant 0.000000e+00 : f32
    %14 = vector.broadcast %cst_9 : f32 to vector<64x128xf32>
    %15 = vector.broadcast %cst_10 : f32 to vector<64x128xf32>
    %16 = arith.select %13, %14, %15 : vector<64x128xi1>, vector<64x128xf32>
    %cst_11 = arith.constant 1.000000e+00 : f32
    %17 = vector.broadcast %cst_11 : f32 to vector<64x128xf32>
    %18 = arith.addf %17, %11 : vector<64x128xf32>
    %19 = tpu.reciprocal %18 {approx = true} : vector<64x128xf32> -> vector<64x128xf32>
    %20 = arith.mulf %19, %16 : vector<64x128xf32>
    %21 = arith.truncf %5 : vector<64x128xf32> to vector<64x128xbf16>
    %22 = math.exp %21 : vector<64x128xbf16>
    %23 = arith.extf %22 : vector<64x128xbf16> to vector<64x128xf32>
    %c0_12 = arith.constant 0 : index
    %c0_13 = arith.constant 0 : index
    %24 = vector.load %arg7[%c0_12, %c0_13] : memref<64x1xf32, #tpu.memory_space<vmem>>, vector<64x1xf32>
    %cst_14 = arith.constant dense<0.000000e+00> : vector<64xf32>
    %25 = vector.multi_reduction <add>, %23, %cst_14 [1] : vector<64x128xf32> to vector<64xf32>
    %26 = vector.shape_cast %25 : vector<64xf32> to vector<64x1xf32>
    %27 = arith.addf %24, %26 : vector<64x1xf32>
    %c0_15 = arith.constant 0 : index
    %c0_16 = arith.constant 0 : index
    %28 = vector.load %arg7[%c0_15, %c0_16] : memref<64x1xf32, #tpu.memory_space<vmem>>, vector<64x1xf32>
    tpu.vector_store %arg7[%c0_15, %c0_16], %27 {strides = array<i32>} : memref<64x1xf32, #tpu.memory_space<vmem>>, vector<64x1xf32>,
    %c0_17 = arith.constant 0 : index
    %c0_18 = arith.constant 0 : index
    %29 = vector.load %arg8[%c0_17, %c0_18] : memref<64x1xf32, #tpu.memory_space<vmem>>, vector<64x1xf32>
    %30 = arith.mulf %5, %20 : vector<64x128xf32>
    %cst_19 = arith.constant dense<0.000000e+00> : vector<64xf32>
    %31 = vector.multi_reduction <add>, %30, %cst_19 [1] : vector<64x128xf32> to vector<64xf32>
    %32 = vector.shape_cast %31 : vector<64xf32> to vector<64x1xf32>
    %33 = arith.addf %29, %32 : vector<64x1xf32>
    %c0_20 = arith.constant 0 : index
    %c0_21 = arith.constant 0 : index
    %34 = vector.load %arg8[%c0_20, %c0_21] : memref<64x1xf32, #tpu.memory_space<vmem>>, vector<64x1xf32>
    tpu.vector_store %arg8[%c0_20, %c0_21], %33 {strides = array<i32>} : memref<64x1xf32, #tpu.memory_space<vmem>>, vector<64x1xf32>,
    %c0_22 = arith.constant 0 : index
    %c0_23 = arith.constant 0 : index
    %35 = vector.load %arg9[%c0_22, %c0_23] : memref<64x1xf32, #tpu.memory_space<vmem>>, vector<64x1xf32>
    %cst_24 = arith.constant dense<0.000000e+00> : vector<64xf32>
    %36 = vector.multi_reduction <add>, %20, %cst_24 [1] : vector<64x128xf32> to vector<64xf32>
    %37 = vector.shape_cast %36 : vector<64xf32> to vector<64x1xf32>
    %38 = arith.addf %35, %37 : vector<64x1xf32>
    %c0_25 = arith.constant 0 : index
    %c0_26 = arith.constant 0 : index
    %39 = vector.load %arg9[%c0_25, %c0_26] : memref<64x1xf32, #tpu.memory_space<vmem>>, vector<64x1xf32>
    tpu.vector_store %arg9[%c0_25, %c0_26], %38 {strides = array<i32>} : memref<64x1xf32, #tpu.memory_space<vmem>>, vector<64x1xf32>,
    %c0_27 = arith.constant 0 : index
    %c0_28 = arith.constant 0 : index
    %40 = vector.load %arg10[%c0_27, %c0_28] : memref<64x1xf32, #tpu.memory_space<vmem>>, vector<64x1xf32>
    %cst_29 = arith.constant dense<0.000000e+00> : vector<64xf32>
    %41 = vector.multi_reduction <add>, %16, %cst_29 [1] : vector<64x128xf32> to vector<64xf32>
    %42 = vector.shape_cast %41 : vector<64xf32> to vector<64x1xf32>
    %43 = arith.addf %40, %42 : vector<64x1xf32>
    %c0_30 = arith.constant 0 : index
    %c0_31 = arith.constant 0 : index
    %44 = vector.load %arg10[%c0_30, %c0_31] : memref<64x1xf32, #tpu.memory_space<vmem>>, vector<64x1xf32>
    tpu.vector_store %arg10[%c0_30, %c0_31], %43 {strides = array<i32>} : memref<64x1xf32, #tpu.memory_space<vmem>>, vector<64x1xf32>,
    %c1_i32 = arith.constant 1 : i32
    %45 = arith.cmpi eq, %arg1, %c1_i32 : i32
    %46 = arith.extui %45 : i1 to i32
    %c0_i32_32 = arith.constant 0 : i32
    %47 = arith.cmpi ne, %46, %c0_i32_32 : i32
    scf.if %47 {
      %c0_33 = arith.constant 0 : index
      %c0_34 = arith.constant 0 : index
      %48 = vector.load %arg7[%c0_33, %c0_34] : memref<64x1xf32, #tpu.memory_space<vmem>>, vector<64x1xf32>
      %cst_35 = arith.constant 110.598152 : f32
      %49 = vector.broadcast %cst_35 : f32 to vector<64x1xf32>
      %50 = arith.subf %48, %49 : vector<64x1xf32>
      %c0_36 = arith.constant 0 : index
      %c0_37 = arith.constant 0 : index
      %51 = vector.load %arg10[%c0_36, %c0_37] : memref<64x1xf32, #tpu.memory_space<vmem>>, vector<64x1xf32>
      %cst_38 = arith.constant 1.000000e+00 : f32
      %52 = vector.broadcast %cst_38 : f32 to vector<64x1xf32>
      %53 = arith.subf %51, %52 : vector<64x1xf32>
      %cst_39 = arith.constant 9.99999997E-7 : f32
      %54 = vector.broadcast %cst_39 : f32 to vector<64x1xf32>
      %55 = arith.addf %50, %54 : vector<64x1xf32>
      %56 = math.log %55 : vector<64x1xf32>
      %c0_40 = arith.constant 0 : index
      %c0_41 = arith.constant 0 : index
      %57 = vector.load %arg8[%c0_40, %c0_41] : memref<64x1xf32, #tpu.memory_space<vmem>>, vector<64x1xf32>
      %cst_42 = arith.constant 4.000000e+00 : f32
      %58 = vector.broadcast %cst_42 : f32 to vector<64x1xf32>
      %59 = arith.subf %57, %58 : vector<64x1xf32>
      %c0_43 = arith.constant 0 : index
      %c0_44 = arith.constant 0 : index
      %60 = vector.load %arg9[%c0_43, %c0_44] : memref<64x1xf32, #tpu.memory_space<vmem>>, vector<64x1xf32>
      %cst_45 = arith.constant 1.000000e+00 : f32
      %61 = vector.broadcast %cst_45 : f32 to vector<64x1xf32>
      %62 = arith.subf %60, %61 : vector<64x1xf32>
      %63 = arith.mulf %56, %62 : vector<64x1xf32>
      %64 = arith.subf %59, %63 : vector<64x1xf32>
      %cst_46 = arith.constant 1.000000e+00 : f32
      %65 = vector.broadcast %cst_46 : f32 to vector<64x1xf32>
      %66 = arith.maximumf %53, %65 : vector<64x1xf32>
      %67 = arith.divf %64, %66 : vector<64x1xf32>
      %cst_47 = arith.constant 0.000000e+00 : f32
      %68 = vector.broadcast %cst_47 : f32 to vector<64x1xf32>
      %69 = arith.subf %68, %67 : vector<64x1xf32>
      %cst_48 = arith.constant 5.000000e-01 : f32
      %70 = vector.broadcast %cst_48 : f32 to vector<64x1xf32>
      %71 = arith.mulf %69, %70 : vector<64x1xf32>
      %72 = tpu.iota {dimensions = array<i32: 1>} : vector<64x128xi32>
      %c0_i32_49 = arith.constant 0 : i32
      %73 = vector.broadcast %c0_i32_49 : i32 to vector<64x128xi32>
      %74 = arith.cmpi eq, %72, %73 : vector<64x128xi32>
      %c1_i32_50 = arith.constant 1 : i32
      %75 = vector.broadcast %c1_i32_50 : i32 to vector<64x128xi32>
      %76 = arith.cmpi eq, %72, %75 : vector<64x128xi32>
      %cst_51 = arith.constant 0.000000e+00 : f32
      %77 = vector.shape_cast %53 : vector<64x1xf32> to vector<64x1xf32>
      %78 = vector.broadcast %77 : vector<64x1xf32> to vector<64x128xf32>
      %79 = vector.broadcast %cst_51 : f32 to vector<64x128xf32>
      %80 = arith.select %76, %78, %79 : vector<64x128xi1>, vector<64x128xf32>
      %81 = vector.shape_cast %71 : vector<64x1xf32> to vector<64x1xf32>
      %82 = vector.broadcast %81 : vector<64x1xf32> to vector<64x128xf32>
      %83 = arith.select %74, %82, %80 : vector<64x128xi1>, vector<64x128xf32>
      %c0_52 = arith.constant 0 : index
      %c0_53 = arith.constant 0 : index
      %84 = vector.load %arg6[%c0_52, %c0_53] : memref<64x128xf32, #tpu.memory_space<vmem>>, vector<64x128xf32>
      tpu.vector_store %arg6[%c0_52, %c0_53], %83 {strides = array<i32>} : memref<64x128xf32, #tpu.memory_space<vmem>>, vector<64x128xf32>,
    } else {
    }
    return
  }
  func.func @transform_0(%arg0: i32, %arg1: i32) -> (i32, i32) {
    %c0_i32 = arith.constant 0 : i32
    %c0_i32_0 = arith.constant 0 : i32
    return %arg0, %c0_i32 : i32, i32
  }
  func.func @transform_1(%arg0: i32, %arg1: i32) -> (i32, i32) {
    %c0_i32 = arith.constant 0 : i32
    %c0_i32_0 = arith.constant 0 : i32
    return %c0_i32, %arg1 : i32, i32
  }
  func.func @transform_2(%arg0: i32, %arg1: i32) -> (i32, i32) {
    %c0_i32 = arith.constant 0 : i32
    %c0_i32_0 = arith.constant 0 : i32
    return %c0_i32, %arg1 : i32, i32
  }
  func.func @transform_3(%arg0: i32, %arg1: i32) -> (i32, i32) {
    %c0_i32 = arith.constant 0 : i32
    %c0_i32_0 = arith.constant 0 : i32
    return %arg0, %c0_i32 : i32, i32
  }
  func.func @transform_4(%arg0: i32, %arg1: i32) -> (i32, i32) {
    %c0_i32 = arith.constant 0 : i32
    %c0_i32_0 = arith.constant 0 : i32
    return %arg0, %c0_i32 : i32, i32
  }
}

</mosaic_0001>

<llo_original>
// kernel: _supcon_forward.1
$region0: #{_supcon_forward.1}
  #allocation0 [shape = 'u32[]', space=smem, size = 0x4, offset = 0x4, fixed_abs, tag = 'smem constant byte address 0x4 - core index']
  #allocation1 [shape = 'u32[72,128]{1,0:T(1,128)}', space=vmem, size = 0x9000, scoped, tag = 'internal scratch']
  #allocation2 [shape = 'f32[64,1]{1,0:T(8,128)}', space=vmem, size = 0x8000, scoped, tag = 'scratch operand']
  #allocation3 [shape = 'f32[64,1]{1,0:T(8,128)}', space=vmem, size = 0x8000, scoped, tag = 'scratch operand']
  #allocation4 [shape = 'f32[64,1]{1,0:T(8,128)}', space=vmem, size = 0x8000, scoped, tag = 'scratch operand']
  #allocation5 [shape = 'f32[64,1]{1,0:T(8,128)}', space=vmem, size = 0x8000, scoped, tag = 'scratch operand']
  %s0 = inlined_call_operand.vmem [shape: bf16[256,64], index: 0, kind: input, shape index: {}]
  %s1 = inlined_call_operand.vmem [shape: bf16[64,256], index: 1, kind: input, shape index: {}]
  %s2 = inlined_call_operand.vmem [shape: f32[1,256], index: 2, kind: input, shape index: {}]
  %s3 = inlined_call_operand.vmem [shape: f32[256,1], index: 3, kind: input, shape index: {}]
  %s4 = inlined_call_operand.vmem [shape: f32[256,128], index: 4, kind: output, shape index: {}]
  %s5 = sld [smem:[#allocation0]]
  $region98: #{_supcon_forward.1} parent=0
    _
  %s7 = ssub.s32 1, %s5
  %s8 = scalar_select 0, %s7, %s5
  $region1: #{_supcon_forward.1} parent=0
    #allocation6 [shape = 'u8[32768]{0}', space=vmem, size = 0x8000, scoped, tag = 'input window, operand 1']
    loop: start=0, step=1, limit=10
    $region2: #{_supcon_forward.1} parent=1 // loop_pre_header
      _
    $region3: #{_supcon_forward.1} parent=1 // loop_header
      %s10 = sphi 0, %s14
      %p11 = scmp.ge.s32.totalorder %s10, 10
      %s17 = sphi 0, %s29
      %s18 = sphi 0, %s25
      %s19 = sphi 0, %s17
      %s20 = sphi 0, %s18
      %s21 = sphi 0, %s19
      %s22 = sphi 0, %s20
      %s32 = sphi 0, %s34
      %s35 = sphi 0, %s32
      %s36 = sphi 0, %s35
      %s52 = sphi 0, %s36
      %s58 = sphi 0, %s60
      %s61 = sphi 0, %s58
      %s62 = sphi 0, %s61
      %s78 = sphi 0, %s62
      %s84 = sphi 0, %s86
      %s87 = sphi 0, %s84
      %s88 = sphi 0, %s87
      %s104 = sphi 0, %s88
      %s110 = sphi 0, %s112
      %s113 = sphi 0, %s110
      %s114 = sphi 0, %s113
      %s130 = sphi 0, %s114
      %s136 = sphi 0, %s138
      %s139 = sphi 0, %s136
      %s140 = sphi 0, %s139
      %s156 = sphi 0, %s140
    $region4: #{_supcon_forward.1} parent=1 // loop_header_branch
      %13 = sbr.rel (%p11) target = $region8
    $region5: #{_supcon_forward.1} parent=1 // loop_body
      %s15 = ssub.s32 %s10, 1
      %s16 = ssub.s32 %s10, 2
      %s23 = sadd.s32 1, %s18
      %p24 = scmp.ge.s32.totalorder %s23, 2
      %s25 = scalar_select %p24, 0, %s23
      %s26 = sadd.s32 1, %s17
      %s27 = scalar_select %p24, %s26, %s17
      %p28 = scmp.ge.s32.totalorder %s27, 4
      %s29 = scalar_select %p28, 0, %s27
      %s30 = ssub.s32 %s17, %s29
      %p31 = scmp.eq.s32.totalorder %s30, 0
      %s33 = sadd.s32 %s32, 1
      %s34 = scalar_select %p31, %s32, %s33
      %p37 = pneg %p31
      %p38 = scmp.eq.s32.totalorder %s10, 7
      %p39 = por %p37, %p38
      %p40 = scmp.ne.s32.totalorder %s32, %s35
      %p41 = scmp.eq.s32.totalorder %s10, 0
      %p42 = por %p40, %p41
      %p43 = scmp.ne.s32.totalorder %s32, %s35
      %p44 = scmp.eq.s32.totalorder %s15, 7
      %p45 = por %p43, %p44
      %p46 = scmp.ne.s32.totalorder %s35, %s36
      %p47 = scmp.eq.s32.totalorder %s15, 0
      %p48 = por %p46, %p47
      %p49 = scmp.ne.s32.totalorder %s35, %s36
      %p50 = scmp.eq.s32.totalorder %s16, 7
      %p51 = por %p49, %p50
      %p53 = scmp.ne.s32.totalorder %s36, %s52
      %p54 = scmp.eq.s32.totalorder %s16, 0
      %p55 = por %p53, %p54
      %s56 = ssub.s32 %s18, %s25
      %p57 = scmp.eq.s32.totalorder %s56, 0
      %s59 = sadd.s32 %s58, 1
      %s60 = scalar_select %p57, %s58, %s59
      %p63 = pneg %p57
      %p64 = scmp.eq.s32.totalorder %s10, 7
      %p65 = por %p63, %p64
      %p66 = scmp.ne.s32.totalorder %s58, %s61
      %p67 = scmp.eq.s32.totalorder %s10, 0
      %p68 = por %p66, %p67
      %p69 = scmp.ne.s32.totalorder %s58, %s61
      %p70 = scmp.eq.s32.totalorder %s15, 7
      %p71 = por %p69, %p70
      %p72 = scmp.ne.s32.totalorder %s61, %s62
      %p73 = scmp.eq.s32.totalorder %s15, 0
      %p74 = por %p72, %p73
      %p75 = scmp.ne.s32.totalorder %s61, %s62
      %p76 = scmp.eq.s32.totalorder %s16, 7
      %p77 = por %p75, %p76
      %p79 = scmp.ne.s32.totalorder %s62, %s78
      %p80 = scmp.eq.s32.totalorder %s16, 0
      %p81 = por %p79, %p80
      %s82 = ssub.s32 %s18, %s25
      %p83 = scmp.eq.s32.totalorder %s82, 0
      %s85 = sadd.s32 %s84, 1
      %s86 = scalar_select %p83, %s84, %s85
      %p89 = pneg %p83
      %p90 = scmp.eq.s32.totalorder %s10, 7
      %p91 = por %p89, %p90
      %p92 = scmp.ne.s32.totalorder %s84, %s87
      %p93 = scmp.eq.s32.totalorder %s10, 0
      %p94 = por %p92, %p93
      %p95 = scmp.ne.s32.totalorder %s84, %s87
      %p96 = scmp.eq.s32.totalorder %s15, 7
      %p97 = por %p95, %p96
      %p98 = scmp.ne.s32.totalorder %s87, %s88
      %p99 = scmp.eq.s32.totalorder %s15, 0
      %p100 = por %p98, %p99
      %p101 = scmp.ne.s32.totalorder %s87, %s88
      %p102 = scmp.eq.s32.totalorder %s16, 7
      %p103 = por %p101, %p102
      %p105 = scmp.ne.s32.totalorder %s88, %s104
      %p106 = scmp.eq.s32.totalorder %s16, 0
      %p107 = por %p105, %p106
      %s108 = ssub.s32 %s17, %s29
      %p109 = scmp.eq.s32.totalorder %s108, 0
      %s111 = sadd.s32 %s110, 1
      %s112 = scalar_select %p109, %s110, %s111
      %p115 = pneg %p109
      %p116 = scmp.eq.s32.totalorder %s10, 7
      %p117 = por %p115, %p116
      %p118 = scmp.ne.s32.totalorder %s110, %s113
      %p119 = scmp.eq.s32.totalorder %s10, 0
      %p120 = por %p118, %p119
      %p121 = scmp.ne.s32.totalorder %s110, %s113
      %p122 = scmp.eq.s32.totalorder %s15, 7
      %p123 = por %p121, %p122
      %p124 = scmp.ne.s32.totalorder %s113, %s114
      %p125 = scmp.eq.s32.totalorder %s15, 0
      %p126 = por %p124, %p125
      %p127 = scmp.ne.s32.totalorder %s113, %s114
      %p128 = scmp.eq.s32.totalorder %s16, 7
      %p129 = por %p127, %p128
      %p131 = scmp.ne.s32.totalorder %s114, %s130
      %p132 = scmp.eq.s32.totalorder %s16, 0
      %p133 = por %p131, %p132
      %s134 = ssub.s32 %s17, %s29
      %p135 = scmp.eq.s32.totalorder %s134, 0
      %s137 = sadd.s32 %s136, 1
      %s138 = scalar_select %p135, %s136, %s137
      %p141 = pneg %p135
      %p142 = scmp.eq.s32.totalorder %s10, 7
      %p143 = por %p141, %p142
      %p144 = scmp.ne.s32.totalorder %s136, %s139
      %p145 = scmp.eq.s32.totalorder %s10, 0
      %p146 = por %p144, %p145
      %p147 = scmp.ne.s32.totalorder %s136, %s139
      %p148 = scmp.eq.s32.totalorder %s15, 7
      %p149 = por %p147, %p148
      %p150 = scmp.ne.s32.totalorder %s139, %s140
      %p151 = scmp.eq.s32.totalorder %s15, 0
      %p152 = por %p150, %p151
      %p153 = scmp.ne.s32.totalorder %s139, %s140
      %p154 = scmp.eq.s32.totalorder %s16, 7
      %p155 = por %p153, %p154
      %p157 = scmp.ne.s32.totalorder %s140, %s156
      %p158 = scmp.eq.s32.totalorder %s16, 0
      %p159 = por %p157, %p158
      %p160 = scmp.le.s32.totalorder 1, %s10
      %p161 = scmp.lt.s32.totalorder %s10, 9
      %p162 = pnand %p160, %p161
      %p163 = pneg %p162
      // Predicated region
      $region9: #{_supcon_forward.1} parent=5 // pred_check
        _
      $region10: #{_supcon_forward.1} parent=5 // pred_check_branch
        %165 = sbr.rel (%p162) target = $region12
      $region11: #{_supcon_forward.1} parent=5 // pred_region
        %s166 = ssub.s32 %s10, 1
      $region12: #{_supcon_forward.1} parent=5 // pred_fallthru
        _
      %p167 = scmp.lt.s32.totalorder %s10, 8
      // Predicated region
      $region13: #{_supcon_forward.1} parent=5 // pred_check
        %p168 = pneg %p167
      $region14: #{_supcon_forward.1} parent=5 // pred_check_branch
        %170 = sbr.rel (%p168) target = $region16
      $region15: #{_supcon_forward.1} parent=5 // pred_region
        // Predicated region
        $region17: #{_supcon_forward.1} parent=15 // pred_check
          %p171 = pneg %p42
        $region18: #{_supcon_forward.1} parent=15 // pred_check_branch
          %173 = sbr.rel (%p171) target = $region20
        $region19: #{_supcon_forward.1} parent=15 // pred_region
          %s174 = smul.u32 8, %s17
          %p175 = scmp.lt.s32.totalorder %s174, 31
          %s176 = scalar_select %p175, %s174, 31
          %s177 = smul.addr %s176, 4
          %s178 = scalar_lea.vmem %s0, %s177
          %s179 = smul.u32 8, %s17
        $region20: #{_supcon_forward.1} parent=15 // pred_fallthru
          _
        // Predicated region
        $region21: #{_supcon_forward.1} parent=15 // pred_check
          %p180 = pneg %p68
        $region22: #{_supcon_forward.1} parent=15 // pred_check_branch
          %182 = sbr.rel (%p180) target = $region24
        $region23: #{_supcon_forward.1} parent=15 // pred_region
          %s183 = sand.u32 %s58, 1
          %s184 = sand.u32 %s58, 1
          %s185 = smul.addr %s184, 32
          %s186 = scalar_lea.vmem [#allocation6], %s185
          %s187 = smul.addr %s18, 4
          %s188 = scalar_lea.vmem %s1, %s187
          // Predicated region
          $region25: #{_supcon_forward.1} parent=23 // pred_check
            _
          $region26: #{_supcon_forward.1} parent=23 // pred_check_branch
            %190 = sbr.rel (0) target = $region28
          $region27: #{_supcon_forward.1} parent=23 // pred_region
            // Predicated region
            $region29: #{_supcon_forward.1} parent=27 // pred_check
              _
            $region30: #{_supcon_forward.1} parent=27 // pred_check_branch
              %192 = sbr.rel target = $region32
            $region31: #{_supcon_forward.1} parent=27 // pred_region
              // Predicated region
              $region44: #{_supcon_forward.1} parent=31 // pred_check
                _
              $region45: #{_supcon_forward.1} parent=31 // pred_check_branch
                %222 = sbr.rel (0) target = $region47
              $region46: #{_supcon_forward.1} parent=31 // pred_region
                loop: start=0, step=1, limit=1
                $region48: #{_supcon_forward.1} parent=46 // loop_pre_header
                  _
                $region49: #{_supcon_forward.1} parent=46 // loop_header
                  %s224 = sphi 0, %s228
                  %p225 = scmp.ge.s32.totalorder %s224, 1
                  %s229 = sphi %s188, %s188
                  %s230 = sphi %s186, %s186
                $region50: #{_supcon_forward.1} parent=46 // loop_header_branch
                  %227 = sbr.rel (%p225) target = $region54
                $region51: #{_supcon_forward.1} parent=46 // loop_body
                  _
                $region52: #{_supcon_forward.1} parent=46 // loop_footer
                  %s228 = sadd.s32 1, %s224
                $region53: #{_supcon_forward.1} parent=46 // loop_footer_branch
                  %223 = sbr.rel target = $region49
                $region54: #{_supcon_forward.1} parent=46 // loop_exit
                  _
                %s232 = ssub.s32 16, 1
                loop: start=0, step=1, limit=1
                $region55: #{_supcon_forward.1} parent=46 // loop_pre_header
                  _
                $region56: #{_supcon_forward.1} parent=46 // loop_header
                  %s234 = sphi 0, %s238
                  %p235 = scmp.ge.s32.totalorder %s234, 1
                  %s239 = sphi %s188, %s188
                  %s240 = sphi %s186, %s186
                $region57: #{_supcon_forward.1} parent=46 // loop_header_branch
                  %237 = sbr.rel (%p235) target = $region61
                $region58: #{_supcon_forward.1} parent=46 // loop_body
                  %v241 = vld [vmem:[%s239] sm:%s232]
                  %242 = vst [vmem:[%s240] sm:%s232] %v241
                  %v243 = vld [vmem:[%s239 + $0x8] sm:%s232]
                  %244 = vst [vmem:[%s240 + $0x4] sm:%s232] %v243
                  %v245 = vld [vmem:[%s239 + $0x10] sm:%s232]
                  %246 = vst [vmem:[%s240 + $0x8] sm:%s232] %v245
                  %v247 = vld [vmem:[%s239 + $0x18] sm:%s232]
                  %248 = vst [vmem:[%s240 + $0xc] sm:%s232] %v247
                  %v249 = vld [vmem:[%s239 + $0x20] sm:%s232]
                  %250 = vst [vmem:[%s240 + $0x10] sm:%s232] %v249
                  %v251 = vld [vmem:[%s239 + $0x28] sm:%s232]
                  %252 = vst [vmem:[%s240 + $0x14] sm:%s232] %v251
                  %v253 = vld [vmem:[%s239 + $0x30] sm:%s232]
                  %254 = vst [vmem:[%s240 + $0x18] sm:%s232] %v253
                  %v255 = vld [vmem:[%s239 + $0x38] sm:%s232]
                  %256 = vst [vmem:[%s240 + $0x1c] sm:%s232] %v255
                $region59: #{_supcon_forward.1} parent=46 // loop_footer
                  %s238 = sadd.s32 1, %s234
                $region60: #{_supcon_forward.1} parent=46 // loop_footer_branch
                  %233 = sbr.rel target = $region56
                $region61: #{_supcon_forward.1} parent=46 // loop_exit
                  _
              $region47: #{_supcon_forward.1} parent=31 // pred_fallthru
                _
            $region32: #{_supcon_forward.1} parent=27 // pred_fallthru
              _
            // Predicated region
            $region33: #{_supcon_forward.1} parent=27 // pred_check
              _
            $region34: #{_supcon_forward.1} parent=27 // pred_check_branch
              %194 = sbr.rel (0) target = $region36
            $region35: #{_supcon_forward.1} parent=27 // pred_region
              %s196 = ssub.s32 16, 1
              loop: start=0, step=1, limit=1
              $region37: #{_supcon_forward.1} parent=35 // loop_pre_header
                _
              $region38: #{_supcon_forward.1} parent=35 // loop_header
                %s198 = sphi 0, %s202
                %p199 = scmp.ge.s32.totalorder %s198, 1
                %s203 = sphi %s188, %s188
                %s204 = sphi %s186, %s186
              $region39: #{_supcon_forward.1} parent=35 // loop_header_branch
                %201 = sbr.rel (%p199) target = $region43
              $region40: #{_supcon_forward.1} parent=35 // loop_body
                %v205 = vld [vmem:[%s203] sm:%s196]
                %206 = vst [vmem:[%s204] sm:%s196] %v205
                %v207 = vld [vmem:[%s203 + $0x8] sm:%s196]
                %208 = vst [vmem:[%s204 + $0x4] sm:%s196] %v207
                %v209 = vld [vmem:[%s203 + $0x10] sm:%s196]
                %210 = vst [vmem:[%s204 + $0x8] sm:%s196] %v209
                %v211 = vld [vmem:[%s203 + $0x18] sm:%s196]
                %212 = vst [vmem:[%s204 + $0xc] sm:%s196] %v211
                %v213 = vld [vmem:[%s203 + $0x20] sm:%s196]
                %214 = vst [vmem:[%s204 + $0x10] sm:%s196] %v213
                %v215 = vld [vmem:[%s203 + $0x28] sm:%s196]
                %216 = vst [vmem:[%s204 + $0x14] sm:%s196] %v215
                %v217 = vld [vmem:[%s203 + $0x30] sm:%s196]
                %218 = vst [vmem:[%s204 + $0x18] sm:%s196] %v217
                %v219 = vld [vmem:[%s203 + $0x38] sm:%s196]
                %220 = vst [vmem:[%s204 + $0x1c] sm:%s196] %v219
              $region41: #{_supcon_forward.1} parent=35 // loop_footer
                %s202 = sadd.s32 1, %s198
              $region42: #{_supcon_forward.1} parent=35 // loop_footer_branch
                %197 = sbr.rel target = $region38
              $region43: #{_supcon_forward.1} parent=35 // loop_exit
                _
            $region36: #{_supcon_forward.1} parent=27 // pred_fallthru
              _
          $region28: #{_supcon_forward.1} parent=23 // pred_fallthru
            _
          %257 = vnop
        $region24: #{_supcon_forward.1} parent=15 // pred_fallthru
          _
        // Predicated region
        $region62: #{_supcon_forward.1} parent=15 // pred_check
          %p258 = pneg %p94
        $region63: #{_supcon_forward.1} parent=15 // pred_check_branch
          %260 = sbr.rel (%p258) target = $region65
        $region64: #{_supcon_forward.1} parent=15 // pred_region
          %p261 = scmp.lt.s32.totalorder %s18, 1
          %s262 = scalar_select %p261, %s18, 1
          %s263 = scalar_lea.vmem %s2, %s262
        $region65: #{_supcon_forward.1} parent=15 // pred_fallthru
          _
        // Predicated region
        $region66: #{_supcon_forward.1} parent=15 // pred_check
          %p264 = pneg %p120
        $region67: #{_supcon_forward.1} parent=15 // pred_check_branch
          %266 = sbr.rel (%p264) target = $region69
        $region68: #{_supcon_forward.1} parent=15 // pred_region
          %s267 = smul.u32 8, %s17
          %p268 = scmp.lt.s32.totalorder %s267, 31
          %s269 = scalar_select %p268, %s267, 31
          %s270 = smul.addr %s269, 8
          %s271 = scalar_lea.vmem %s3, %s270
          %s272 = smul.u32 8, %s17
        $region69: #{_supcon_forward.1} parent=15 // pred_fallthru
          _
      $region16: #{_supcon_forward.1} parent=5 // pred_fallthru
        _
      %p273 = scmp.le.s32.totalorder 1, %s10
      %p274 = scmp.lt.s32.totalorder %s10, 9
      %p275 = pnand %p273, %p274
      %p276 = pneg %p275
      // Predicated region
      $region70: #{_supcon_forward.1} parent=5 // pred_check
        _
      $region71: #{_supcon_forward.1} parent=5 // pred_check_branch
        %278 = sbr.rel (%p275) target = $region73
      $region72: #{_supcon_forward.1} parent=5 // pred_region
        %s279 = ssub.s32 %s10, 1
        %s280 = sand.u32 %s61, 1
        %s281 = sand.u32 %s61, 1
        %s282 = smul.addr %s281, 32
        %s283 = scalar_lea.vmem [#allocation6], %s282
        // Predicated region
        $region74: #{_supcon_forward.1} parent=72 // pred_check
          %p284 = pneg %p74
        $region75: #{_supcon_forward.1} parent=72 // pred_check_branch
          %286 = sbr.rel (%p284) target = $region77
        $region76: #{_supcon_forward.1} parent=72 // pred_region
          _
        $region77: #{_supcon_forward.1} parent=72 // pred_fallthru
          _
        %s287 = smul.u32 8, %s19
        %p288 = scmp.lt.s32.totalorder %s287, 31
        %s289 = scalar_select %p288, %s287, 31
        %s290 = smul.addr %s289, 4
        %s291 = scalar_lea.vmem %s0, %s290
        %p292 = pneg %p48
        %p293 = pneg %p45
        %s294 = sand.u32 %s61, 1
        %s295 = sand.u32 %s61, 1
        %s296 = smul.addr %s295, 32
        %s297 = scalar_lea.vmem [#allocation6], %s296
        %p298 = pneg %p74
        %p299 = pneg %p71
        %p300 = scmp.lt.s32.totalorder %s20, 1
        %s301 = scalar_select %p300, %s20, 1
        %s302 = scalar_lea.vmem %s2, %s301
        %p303 = pneg %p100
        %p304 = pneg %p97
        %s305 = smul.u32 8, %s19
        %p306 = scmp.lt.s32.totalorder %s305, 31
        %s307 = scalar_select %p306, %s305, 31
        %s308 = smul.addr %s307, 8
        %s309 = scalar_lea.vmem %s3, %s308
        %p310 = pneg %p126
        %p311 = pneg %p123
        %p312 = pneg %p152
        %p313 = pneg %p149
        %s314 = smul.u32 8, %s19
        %p315 = scmp.lt.s32.totalorder %s314, 31
        %s316 = scalar_select %p315, %s314, 31
        %s317 = smul.addr %s316, 8
        %s318 = scalar_lea.vmem %s4, %s317
        %s319 = smul.u32 8, %s19
        %p320 = scmp.lt.s32.totalorder %s319, 31
        %s321 = scalar_select %p320, %s319, 31
        %s322 = smul.addr %s321, 4
        %s323 = scalar_lea.vmem %s0, %s322
        %s324 = smul.u32 8, %s19
        %p325 = scmp.lt.s32.totalorder %s20, 1
        %s326 = scalar_select %p325, %s20, 1
        %s327 = scalar_lea.vmem %s2, %s326
        %s328 = smul.u32 8, %s19
        %p329 = scmp.lt.s32.totalorder %s328, 31
        %s330 = scalar_select %p329, %s328, 31
        %s331 = smul.addr %s330, 8
        %s332 = scalar_lea.vmem %s3, %s331
        %s333 = smul.u32 8, %s19
        %s334 = smul.u32 8, %s19
        %p335 = scmp.lt.s32.totalorder %s334, 31
        %s336 = scalar_select %p335, %s334, 31
        %s337 = smul.addr %s336, 8
        %s338 = scalar_lea.vmem %s4, %s337
        %s339 = smul.u32 8, %s19
        %p341 = scmp.eq.s32.totalorder %s20, 0
        // Predicated region
        $region78: #{_supcon_forward.1} parent=72 // pred_check
          %p342 = pneg %p341
        $region79: #{_supcon_forward.1} parent=72 // pred_check_branch
          %344 = sbr.rel (%p342) target = $region81
        $region80: #{_supcon_forward.1} parent=72 // pred_region
          %vm345 = vcmask 7168
          %346 = vst.msk [vmem:[#allocation2] sm:$0xff] %vm345, 0.0
          %347 = vst.msk [vmem:[#allocation2 + $0x8] sm:$0xff] %vm345, 0.0
          %348 = vst.msk [vmem:[#allocation2 + $0x10] sm:$0xff] %vm345, 0.0
          %349 = vst.msk [vmem:[#allocation2 + $0x18] sm:$0xff] %vm345, 0.0
          %350 = vst.msk [vmem:[#allocation2 + $0x20] sm:$0xff] %vm345, 0.0
          %351 = vst.msk [vmem:[#allocation2 + $0x28] sm:$0xff] %vm345, 0.0
          %352 = vst.msk [vmem:[#allocation2 + $0x30] sm:$0xff] %vm345, 0.0
          %353 = vst.msk [vmem:[#allocation2 + $0x38] sm:$0xff] %vm345, 0.0
          %354 = vst.msk [vmem:[#allocation3] sm:$0xff] %vm345, 0.0
          %355 = vst.msk [vmem:[#allocation3 + $0x8] sm:$0xff] %vm345, 0.0
          %356 = vst.msk [vmem:[#allocation3 + $0x10] sm:$0xff] %vm345, 0.0
          %357 = vst.msk [vmem:[#allocation3 + $0x18] sm:$0xff] %vm345, 0.0
          %358 = vst.msk [vmem:[#allocation3 + $0x20] sm:$0xff] %vm345, 0.0
          %359 = vst.msk [vmem:[#allocation3 + $0x28] sm:$0xff] %vm345, 0.0
          %360 = vst.msk [vmem:[#allocation3 + $0x30] sm:$0xff] %vm345, 0.0
          %361 = vst.msk [vmem:[#allocation3 + $0x38] sm:$0xff] %vm345, 0.0
          %362 = vst.msk [vmem:[#allocation4] sm:$0xff] %vm345, 0.0
          %363 = vst.msk [vmem:[#allocation4 + $0x8] sm:$0xff] %vm345, 0.0
          %364 = vst.msk [vmem:[#allocation4 + $0x10] sm:$0xff] %vm345, 0.0
          %365 = vst.msk [vmem:[#allocation4 + $0x18] sm:$0xff] %vm345, 0.0
          %366 = vst.msk [vmem:[#allocation4 + $0x20] sm:$0xff] %vm345, 0.0
          %367 = vst.msk [vmem:[#allocation4 + $0x28] sm:$0xff] %vm345, 0.0
          %368 = vst.msk [vmem:[#allocation4 + $0x30] sm:$0xff] %vm345, 0.0
          %369 = vst.msk [vmem:[#allocation4 + $0x38] sm:$0xff] %vm345, 0.0
          %370 = vst.msk [vmem:[#allocation5] sm:$0xff] %vm345, 0.0
          %371 = vst.msk [vmem:[#allocation5 + $0x8] sm:$0xff] %vm345, 0.0
          %372 = vst.msk [vmem:[#allocation5 + $0x10] sm:$0xff] %vm345, 0.0
          %373 = vst.msk [vmem:[#allocation5 + $0x18] sm:$0xff] %vm345, 0.0
          %374 = vst.msk [vmem:[#allocation5 + $0x20] sm:$0xff] %vm345, 0.0
          %375 = vst.msk [vmem:[#allocation5 + $0x28] sm:$0xff] %vm345, 0.0
          %376 = vst.msk [vmem:[#allocation5 + $0x30] sm:$0xff] %vm345, 0.0
          %377 = vst.msk [vmem:[#allocation5 + $0x38] sm:$0xff] %vm345, 0.0
        $region81: #{_supcon_forward.1} parent=72 // pred_fallthru
          _
        %v378 = vld [vmem:[%s323] sm:$0xf]
        %v379 = vld [vmem:[%s323 + $0x4] sm:$0xf]
        %v380 = vld [vmem:[%s323 + $0x8] sm:$0xf]
        %v381 = vld [vmem:[%s323 + $0xc] sm:$0xf]
        %v382 = vld [vmem:[%s323 + $0x10] sm:$0xf]
        %v383 = vld [vmem:[%s323 + $0x14] sm:$0xf]
        %v384 = vld [vmem:[%s323 + $0x18] sm:$0xf]
        %v385 = vld [vmem:[%s323 + $0x1c] sm:$0xf]
        %v386 = vld [vmem:[%s283] sm:$0xf]
        %v387 = vld [vmem:[%s283 + $0x4] sm:$0xf]
        %v388 = vld [vmem:[%s283 + $0x8] sm:$0xf]
        %v389 = vld [vmem:[%s283 + $0xc] sm:$0xf]
        %v390 = vld [vmem:[%s283 + $0x10] sm:$0xf]
        %v391 = vld [vmem:[%s283 + $0x14] sm:$0xf]
        %v392 = vld [vmem:[%s283 + $0x18] sm:$0xf]
        %v393 = vld [vmem:[%s283 + $0x1c] sm:$0xf]
        %v402 = vunpack.c.l.b16 %v378
        %v403 = vunpack.c.l.b16 %v379
        %v404 = vunpack.c.l.b16 %v380
        %v405 = vunpack.c.l.b16 %v381
        %v406 = vunpack.c.l.b16 %v382
        %v407 = vunpack.c.l.b16 %v383
        %v408 = vunpack.c.l.b16 %v384
        %v409 = vunpack.c.l.b16 %v385
        %v410 = vpack.c.b16 %v403, %v402
        %v411 = vpack.c.b16 %v405, %v404
        %v412 = vpack.c.b16 %v407, %v406
        %v413 = vpack.c.b16 %v409, %v408
        %v422 = vunpack.c.l.b16 %v386
        %v423 = vunpack.c.l.b16 %v387
        %v424 = vunpack.c.l.b16 %v388
        %v425 = vunpack.c.l.b16 %v389
        %v426 = vunpack.c.l.b16 %v390
        %v427 = vunpack.c.l.b16 %v391
        %v428 = vunpack.c.l.b16 %v392
        %v429 = vunpack.c.l.b16 %v393
        %v430 = vpack.c.b16 %v423, %v422
        %v431 = vpack.c.b16 %v425, %v424
        %v432 = vpack.c.b16 %v427, %v426
        %v433 = vpack.c.b16 %v429, %v428
        %vm438 = vcmask 523264
        %v440 = vsel %vm438, %v410, 0
        %v443 = vsel %vm438, %v411, 0
        %v446 = vsel %vm438, %v412, 0
        %v449 = vsel %vm438, %v413, 0
        %451 = vmatpush.bf16.msra.mxu0 0
        %452 = vmatpush.bf16.msra.mxu0 0
        %453 = vmatpush.bf16.msra.mxu0 0
        %454 = vmatpush.bf16.msra.mxu0 0
        %455 = vmatpush.bf16.msra.mxu0 %v433
        %456 = vmatpush.bf16.msra.mxu0 %v432
        %457 = vmatpush.bf16.msra.mxu0 %v431
        %458 = vmatpush.bf16.msra.mxu0 %v430
        %459 = vmatmul.bf16.gmra.mxu0 %v440
        %v460 = vpop.f32.mrf.mxu0
        %v461 = vadd.f32 0.0, %v460
        %v462 = vpop.f32.mrf.mxu0
        %v463 = vadd.f32 0.0, %v462
        %464 = vmatmul.bf16.gmra.mxu0 %v443
        %v465 = vpop.f32.mrf.mxu0
        %v466 = vadd.f32 0.0, %v465
        %v467 = vpop.f32.mrf.mxu0
        %v468 = vadd.f32 0.0, %v467
        %469 = vmatmul.bf16.gmra.mxu0 %v446
        %v470 = vpop.f32.mrf.mxu0
        %v471 = vadd.f32 0.0, %v470
        %v472 = vpop.f32.mrf.mxu0
        %v473 = vadd.f32 0.0, %v472
        %474 = vmatmul.bf16.gmra.mxu0 %v449
        %v475 = vpop.f32.mrf.mxu0
        %v476 = vadd.f32 0.0, %v475
        %v477 = vpop.f32.mrf.mxu0
        %v478 = vadd.f32 0.0, %v477
        %479 = vdwg.mxu0
        %v480 = vld [vmem:[%s327] sm:$0x1]
        %v481 = vld [vmem:[%s332] sm:$0xff]
        %v482 = vld [vmem:[%s332 + $0x8] sm:$0xff]
        %v483 = vld [vmem:[%s332 + $0x10] sm:$0xff]
        %v484 = vld [vmem:[%s332 + $0x18] sm:$0xff]
        %v485 = vld [vmem:[%s332 + $0x20] sm:$0xff]
        %v486 = vld [vmem:[%s332 + $0x28] sm:$0xff]
        %v487 = vld [vmem:[%s332 + $0x30] sm:$0xff]
        %v488 = vld [vmem:[%s332 + $0x38] sm:$0xff]
        %v490 = vperm.slane %v480, 0
        %493 = vset.pattern.permute.xlu0 0
        %494 = vperm.xlu0 %493, %v481
        %v495 = vpop.permute.xlu0 %494
        %498 = vset.pattern.permute.xlu0 0
        %499 = vperm.xlu0 %498, %v482
        %v500 = vpop.permute.xlu0 %499
        %503 = vset.pattern.permute.xlu0 0
        %504 = vperm.xlu0 %503, %v483
        %v505 = vpop.permute.xlu0 %504
        %508 = vset.pattern.permute.xlu0 0
        %509 = vperm.xlu0 %508, %v484
        %v510 = vpop.permute.xlu0 %509
        %513 = vset.pattern.permute.xlu0 0
        %514 = vperm.xlu0 %513, %v485
        %v515 = vpop.permute.xlu0 %514
        %518 = vset.pattern.permute.xlu0 0
        %519 = vperm.xlu0 %518, %v486
        %v520 = vpop.permute.xlu0 %519
        %523 = vset.pattern.permute.xlu0 0
        %524 = vperm.xlu0 %523, %v487
        %v525 = vpop.permute.xlu0 %524
        %528 = vset.pattern.permute.xlu0 0
        %529 = vperm.xlu0 %528, %v488
        %v530 = vpop.permute.xlu0 %529
        %v532 = vsub.f32 %v490, %v495
        %v533 = vsub.f32 %v490, %v500
        %v534 = vsub.f32 %v490, %v505
        %v535 = vsub.f32 %v490, %v510
        %v536 = vsub.f32 %v490, %v515
        %v537 = vsub.f32 %v490, %v520
        %v538 = vsub.f32 %v490, %v525
        %v539 = vsub.f32 %v490, %v530
        %v540 = vand.u32 2147483647, %v532
        %v541 = vand.u32 2147483647, %v533
        %v542 = vand.u32 2147483647, %v534
        %v543 = vand.u32 2147483647, %v535
        %v544 = vand.u32 2147483647, %v536
        %v545 = vand.u32 2147483647, %v537
        %v546 = vand.u32 2147483647, %v538
        %v547 = vand.u32 2147483647, %v539
        %vm548 = vcmp.le.f32.partialorder %v540, 1.0
        %vm549 = vcmp.le.f32.partialorder %v541, 1.0
        %vm550 = vcmp.le.f32.partialorder %v542, 1.0
        %vm551 = vcmp.le.f32.partialorder %v543, 1.0
        %vm552 = vcmp.le.f32.partialorder %v544, 1.0
        %vm553 = vcmp.le.f32.partialorder %v545, 1.0
        %vm554 = vcmp.le.f32.partialorder %v546, 1.0
        %vm555 = vcmp.le.f32.partialorder %v547, 1.0
        %v556 = vsel %vm548, 1.0, 0.0
        %v557 = vsel %vm549, 1.0, 0.0
        %v558 = vsel %vm550, 1.0, 0.0
        %v559 = vsel %vm551, 1.0, 0.0
        %v560 = vsel %vm552, 1.0, 0.0
        %v561 = vsel %vm553, 1.0, 0.0
        %v562 = vsel %vm554, 1.0, 0.0
        %v563 = vsel %vm555, 1.0, 0.0
        %v564 = vadd.f32 %v540, 1.0
        %v565 = vadd.f32 %v541, 1.0
        %v566 = vadd.f32 %v542, 1.0
        %v567 = vadd.f32 %v543, 1.0
        %v568 = vadd.f32 %v544, 1.0
        %v569 = vadd.f32 %v545, 1.0
        %v570 = vadd.f32 %v546, 1.0
        %v571 = vadd.f32 %v547, 1.0
        %v572 = vrcp.pop %v564
        %v573 = vrcp.pop %v565
        %v574 = vrcp.pop %v566
        %v575 = vrcp.pop %v567
        %v576 = vrcp.pop %v568
        %v577 = vrcp.pop %v569
        %v578 = vrcp.pop %v570
        %v579 = vrcp.pop %v571
        %v580 = vmul.f32 %v572, %v556
        %v581 = vmul.f32 %v573, %v557
        %v582 = vmul.f32 %v574, %v558
        %v583 = vmul.f32 %v575, %v559
        %v584 = vmul.f32 %v576, %v560
        %v585 = vmul.f32 %v577, %v561
        %v586 = vmul.f32 %v578, %v562
        %v587 = vmul.f32 %v579, %v563
        %v588 = vpack.c.bf16 %v463, %v461
        %v589 = vpack.c.bf16 %v468, %v466
        %v590 = vpack.c.bf16 %v473, %v471
        %v591 = vpack.c.bf16 %v478, %v476
        %v592 = vunpack.c.l.bf16 %v588
        %v593 = vunpack.c.h.bf16 %v588
        %v594 = vunpack.c.l.bf16 %v589
        %v595 = vunpack.c.h.bf16 %v589
        %v596 = vunpack.c.l.bf16 %v590
        %v597 = vunpack.c.h.bf16 %v590
        %v598 = vunpack.c.l.bf16 %v591
        %v599 = vunpack.c.h.bf16 %v591
        %v600 = vmul.f32 %v592, 1.442695
        %v601 = vpow.pop %v600
        %v602 = vmul.f32 %v593, 1.442695
        %v603 = vpow.pop %v602
        %v604 = vmul.f32 %v594, 1.442695
        %v605 = vpow.pop %v604
        %v606 = vmul.f32 %v595, 1.442695
        %v607 = vpow.pop %v606
        %v608 = vmul.f32 %v596, 1.442695
        %v609 = vpow.pop %v608
        %v610 = vmul.f32 %v597, 1.442695
        %v611 = vpow.pop %v610
        %v612 = vmul.f32 %v598, 1.442695
        %v613 = vpow.pop %v612
        %v614 = vmul.f32 %v599, 1.442695
        %v615 = vpow.pop %v614
        %v616 = vpack.c.bf16 %v603, %v601
        %v617 = vpack.c.bf16 %v607, %v605
        %v618 = vpack.c.bf16 %v611, %v609
        %v619 = vpack.c.bf16 %v615, %v613
        %v620 = vunpack.c.l.bf16 %v616
        %v621 = vunpack.c.h.bf16 %v616
        %v622 = vunpack.c.l.bf16 %v617
        %v623 = vunpack.c.h.bf16 %v617
        %v624 = vunpack.c.l.bf16 %v618
        %v625 = vunpack.c.h.bf16 %v618
        %v626 = vunpack.c.l.bf16 %v619
        %v627 = vunpack.c.h.bf16 %v619
        %v628 = vld [vmem:[#allocation2] sm:$0xff]
        %v629 = vld [vmem:[#allocation2 + $0x8] sm:$0xff]
        %v630 = vld [vmem:[#allocation2 + $0x10] sm:$0xff]
        %v631 = vld [vmem:[#allocation2 + $0x18] sm:$0xff]
        %v632 = vld [vmem:[#allocation2 + $0x20] sm:$0xff]
        %v633 = vld [vmem:[#allocation2 + $0x28] sm:$0xff]
        %v634 = vld [vmem:[#allocation2 + $0x30] sm:$0xff]
        %v635 = vld [vmem:[#allocation2 + $0x38] sm:$0xff]
        %636 = vadd.xlane.f32.xlu0 %v620
        %v637 = vpop.xlane.xlu0 %636
        %638 = vadd.xlane.f32.xlu0 %v621
        %v639 = vpop.xlane.xlu0 %638
        %640 = vadd.xlane.f32.xlu0 %v622
        %v641 = vpop.xlane.xlu0 %640
        %642 = vadd.xlane.f32.xlu0 %v623
        %v643 = vpop.xlane.xlu0 %642
        %644 = vadd.xlane.f32.xlu0 %v624
        %v645 = vpop.xlane.xlu0 %644
        %646 = vadd.xlane.f32.xlu0 %v625
        %v647 = vpop.xlane.xlu0 %646
        %648 = vadd.xlane.f32.xlu0 %v626
        %v649 = vpop.xlane.xlu0 %648
        %650 = vadd.xlane.f32.xlu0 %v627
        %v651 = vpop.xlane.xlu0 %650
        %v652 = vadd.f32 %v628, %v637
        %v653 = vadd.f32 %v629, %v639
        %v654 = vadd.f32 %v630, %v641
        %v655 = vadd.f32 %v631, %v643
        %v656 = vadd.f32 %v632, %v645
        %v657 = vadd.f32 %v633, %v647
        %v658 = vadd.f32 %v634, %v649
        %v659 = vadd.f32 %v635, %v651
        %vm660 = vcmask 7168
        %661 = vst.msk [vmem:[#allocation2] sm:$0xff] %vm660, %v652
        %662 = vst.msk [vmem:[#allocation2 + $0x8] sm:$0xff] %vm660, %v653
        %663 = vst.msk [vmem:[#allocation2 + $0x10] sm:$0xff] %vm660, %v654
        %664 = vst.msk [vmem:[#allocation2 + $0x18] sm:$0xff] %vm660, %v655
        %665 = vst.msk [vmem:[#allocation2 + $0x20] sm:$0xff] %vm660, %v656
        %666 = vst.msk [vmem:[#allocation2 + $0x28] sm:$0xff] %vm660, %v657
        %667 = vst.msk [vmem:[#allocation2 + $0x30] sm:$0xff] %vm660, %v658
        %668 = vst.msk [vmem:[#allocation2 + $0x38] sm:$0xff] %vm660, %v659
        %v669 = vld [vmem:[#allocation3] sm:$0xff]
        %v670 = vld [vmem:[#allocation3 + $0x8] sm:$0xff]
        %v671 = vld [vmem:[#allocation3 + $0x10] sm:$0xff]
        %v672 = vld [vmem:[#allocation3 + $0x18] sm:$0xff]
        %v673 = vld [vmem:[#allocation3 + $0x20] sm:$0xff]
        %v674 = vld [vmem:[#allocation3 + $0x28] sm:$0xff]
        %v675 = vld [vmem:[#allocation3 + $0x30] sm:$0xff]
        %v676 = vld [vmem:[#allocation3 + $0x38] sm:$0xff]
        %v677 = vmul.f32 %v461, %v580
        %v678 = vmul.f32 %v463, %v581
        %v679 = vmul.f32 %v466, %v582
        %v680 = vmul.f32 %v468, %v583
        %v681 = vmul.f32 %v471, %v584
        %v682 = vmul.f32 %v473, %v585
        %v683 = vmul.f32 %v476, %v586
        %v684 = vmul.f32 %v478, %v587
        %685 = vadd.xlane.f32.xlu0 %v677
        %v686 = vpop.xlane.xlu0 %685
        %687 = vadd.xlane.f32.xlu0 %v678
        %v688 = vpop.xlane.xlu0 %687
        %689 = vadd.xlane.f32.xlu0 %v679
        %v690 = vpop.xlane.xlu0 %689
        %691 = vadd.xlane.f32.xlu0 %v680
        %v692 = vpop.xlane.xlu0 %691
        %693 = vadd.xlane.f32.xlu0 %v681
        %v694 = vpop.xlane.xlu0 %693
        %695 = vadd.xlane.f32.xlu0 %v682
        %v696 = vpop.xlane.xlu0 %695
        %697 = vadd.xlane.f32.xlu0 %v683
        %v698 = vpop.xlane.xlu0 %697
        %699 = vadd.xlane.f32.xlu0 %v684
        %v700 = vpop.xlane.xlu0 %699
        %v701 = vadd.f32 %v669, %v686
        %v702 = vadd.f32 %v670, %v688
        %v703 = vadd.f32 %v671, %v690
        %v704 = vadd.f32 %v672, %v692
        %v705 = vadd.f32 %v673, %v694
        %v706 = vadd.f32 %v674, %v696
        %v707 = vadd.f32 %v675, %v698
        %v708 = vadd.f32 %v676, %v700
        %709 = vst.msk [vmem:[#allocation3] sm:$0xff] %vm660, %v701
        %710 = vst.msk [vmem:[#allocation3 + $0x8] sm:$0xff] %vm660, %v702
        %711 = vst.msk [vmem:[#allocation3 + $0x10] sm:$0xff] %vm660, %v703
        %712 = vst.msk [vmem:[#allocation3 + $0x18] sm:$0xff] %vm660, %v704
        %713 = vst.msk [vmem:[#allocation3 + $0x20] sm:$0xff] %vm660, %v705
        %714 = vst.msk [vmem:[#allocation3 + $0x28] sm:$0xff] %vm660, %v706
        %715 = vst.msk [vmem:[#allocation3 + $0x30] sm:$0xff] %vm660, %v707
        %716 = vst.msk [vmem:[#allocation3 + $0x38] sm:$0xff] %vm660, %v708
        %v717 = vld [vmem:[#allocation4] sm:$0xff]
        %v718 = vld [vmem:[#allocation4 + $0x8] sm:$0xff]
        %v719 = vld [vmem:[#allocation4 + $0x10] sm:$0xff]
        %v720 = vld [vmem:[#allocation4 + $0x18] sm:$0xff]
        %v721 = vld [vmem:[#allocation4 + $0x20] sm:$0xff]
        %v722 = vld [vmem:[#allocation4 + $0x28] sm:$0xff]
        %v723 = vld [vmem:[#allocation4 + $0x30] sm:$0xff]
        %v724 = vld [vmem:[#allocation4 + $0x38] sm:$0xff]
        %725 = vadd.xlane.f32.xlu0 %v580
        %v726 = vpop.xlane.xlu0 %725
        %727 = vadd.xlane.f32.xlu0 %v581
        %v728 = vpop.xlane.xlu0 %727
        %729 = vadd.xlane.f32.xlu0 %v582
        %v730 = vpop.xlane.xlu0 %729
        %731 = vadd.xlane.f32.xlu0 %v583
        %v732 = vpop.xlane.xlu0 %731
        %733 = vadd.xlane.f32.xlu0 %v584
        %v734 = vpop.xlane.xlu0 %733
        %735 = vadd.xlane.f32.xlu0 %v585
        %v736 = vpop.xlane.xlu0 %735
        %737 = vadd.xlane.f32.xlu0 %v586
        %v738 = vpop.xlane.xlu0 %737
        %739 = vadd.xlane.f32.xlu0 %v587
        %v740 = vpop.xlane.xlu0 %739
        %v741 = vadd.f32 %v717, %v726
        %v742 = vadd.f32 %v718, %v728
        %v743 = vadd.f32 %v719, %v730
        %v744 = vadd.f32 %v720, %v732
        %v745 = vadd.f32 %v721, %v734
        %v746 = vadd.f32 %v722, %v736
        %v747 = vadd.f32 %v723, %v738
        %v748 = vadd.f32 %v724, %v740
        %749 = vst.msk [vmem:[#allocation4] sm:$0xff] %vm660, %v741
        %750 = vst.msk [vmem:[#allocation4 + $0x8] sm:$0xff] %vm660, %v742
        %751 = vst.msk [vmem:[#allocation4 + $0x10] sm:$0xff] %vm660, %v743
        %752 = vst.msk [vmem:[#allocation4 + $0x18] sm:$0xff] %vm660, %v744
        %753 = vst.msk [vmem:[#allocation4 + $0x20] sm:$0xff] %vm660, %v745
        %754 = vst.msk [vmem:[#allocation4 + $0x28] sm:$0xff] %vm660, %v746
        %755 = vst.msk [vmem:[#allocation4 + $0x30] sm:$0xff] %vm660, %v747
        %756 = vst.msk [vmem:[#allocation4 + $0x38] sm:$0xff] %vm660, %v748
        %v757 = vld [vmem:[#allocation5] sm:$0xff]
        %v758 = vld [vmem:[#allocation5 + $0x8] sm:$0xff]
        %v759 = vld [vmem:[#allocation5 + $0x10] sm:$0xff]
        %v760 = vld [vmem:[#allocation5 + $0x18] sm:$0xff]
        %v761 = vld [vmem:[#allocation5 + $0x20] sm:$0xff]
        %v762 = vld [vmem:[#allocation5 + $0x28] sm:$0xff]
        %v763 = vld [vmem:[#allocation5 + $0x30] sm:$0xff]
        %v764 = vld [vmem:[#allocation5 + $0x38] sm:$0xff]
        %765 = vadd.xlane.f32.xlu0 %v556
        %v766 = vpop.xlane.xlu0 %765
        %767 = vadd.xlane.f32.xlu0 %v557
        %v768 = vpop.xlane.xlu0 %767
        %769 = vadd.xlane.f32.xlu0 %v558
        %v770 = vpop.xlane.xlu0 %769
        %771 = vadd.xlane.f32.xlu0 %v559
        %v772 = vpop.xlane.xlu0 %771
        %773 = vadd.xlane.f32.xlu0 %v560
        %v774 = vpop.xlane.xlu0 %773
        %775 = vadd.xlane.f32.xlu0 %v561
        %v776 = vpop.xlane.xlu0 %775
        %777 = vadd.xlane.f32.xlu0 %v562
        %v778 = vpop.xlane.xlu0 %777
        %779 = vadd.xlane.f32.xlu0 %v563
        %v780 = vpop.xlane.xlu0 %779
        %v781 = vadd.f32 %v757, %v766
        %v782 = vadd.f32 %v758, %v768
        %v783 = vadd.f32 %v759, %v770
        %v784 = vadd.f32 %v760, %v772
        %v785 = vadd.f32 %v761, %v774
        %v786 = vadd.f32 %v762, %v776
        %v787 = vadd.f32 %v763, %v778
        %v788 = vadd.f32 %v764, %v780
        %789 = vst.msk [vmem:[#allocation5] sm:$0xff] %vm660, %v781
        %790 = vst.msk [vmem:[#allocation5 + $0x8] sm:$0xff] %vm660, %v782
        %791 = vst.msk [vmem:[#allocation5 + $0x10] sm:$0xff] %vm660, %v783
        %792 = vst.msk [vmem:[#allocation5 + $0x18] sm:$0xff] %vm660, %v784
        %793 = vst.msk [vmem:[#allocation5 + $0x20] sm:$0xff] %vm660, %v785
        %794 = vst.msk [vmem:[#allocation5 + $0x28] sm:$0xff] %vm660, %v786
        %795 = vst.msk [vmem:[#allocation5 + $0x30] sm:$0xff] %vm660, %v787
        %796 = vst.msk [vmem:[#allocation5 + $0x38] sm:$0xff] %vm660, %v788
        %p797 = scmp.eq.s32.totalorder %s20, 1
        // Predicated region
        $region82: #{_supcon_forward.1} parent=72 // pred_check
          %p798 = pneg %p797
        $region83: #{_supcon_forward.1} parent=72 // pred_check_branch
          %800 = sbr.rel (%p798) target = $region85
        $region84: #{_supcon_forward.1} parent=72 // pred_region
          %v801 = vld [vmem:[#allocation2] sm:$0xff]
          %v802 = vld [vmem:[#allocation2 + $0x8] sm:$0xff]
          %v803 = vld [vmem:[#allocation2 + $0x10] sm:$0xff]
          %v804 = vld [vmem:[#allocation2 + $0x18] sm:$0xff]
          %v805 = vld [vmem:[#allocation2 + $0x20] sm:$0xff]
          %v806 = vld [vmem:[#allocation2 + $0x28] sm:$0xff]
          %v807 = vld [vmem:[#allocation2 + $0x30] sm:$0xff]
          %v808 = vld [vmem:[#allocation2 + $0x38] sm:$0xff]
          %v809 = vsub.f32 %v801, 110.59815
          %v810 = vsub.f32 %v802, 110.59815
          %v811 = vsub.f32 %v803, 110.59815
          %v812 = vsub.f32 %v804, 110.59815
          %v813 = vsub.f32 %v805, 110.59815
          %v814 = vsub.f32 %v806, 110.59815
          %v815 = vsub.f32 %v807, 110.59815
          %v816 = vsub.f32 %v808, 110.59815
          %v817 = vld [vmem:[#allocation5] sm:$0xff]
          %v818 = vld [vmem:[#allocation5 + $0x8] sm:$0xff]
          %v819 = vld [vmem:[#allocation5 + $0x10] sm:$0xff]
          %v820 = vld [vmem:[#allocation5 + $0x18] sm:$0xff]
          %v821 = vld [vmem:[#allocation5 + $0x20] sm:$0xff]
          %v822 = vld [vmem:[#allocation5 + $0x28] sm:$0xff]
          %v823 = vld [vmem:[#allocation5 + $0x30] sm:$0xff]
          %v824 = vld [vmem:[#allocation5 + $0x38] sm:$0xff]
          %v825 = vsub.f32 %v817, 1.0
          %v826 = vsub.f32 %v818, 1.0
          %v827 = vsub.f32 %v819, 1.0
          %v828 = vsub.f32 %v820, 1.0
          %v829 = vsub.f32 %v821, 1.0
          %v830 = vsub.f32 %v822, 1.0
          %v831 = vsub.f32 %v823, 1.0
          %v832 = vsub.f32 %v824, 1.0
          %v833 = vadd.f32 %v809, 1e-06
          %v834 = vadd.f32 %v810, 1e-06
          %v835 = vadd.f32 %v811, 1e-06
          %v836 = vadd.f32 %v812, 1e-06
          %v837 = vadd.f32 %v813, 1e-06
          %v838 = vadd.f32 %v814, 1e-06
          %v839 = vadd.f32 %v815, 1e-06
          %v840 = vadd.f32 %v816, 1e-06
          %v841 = vlog2.pop %v833
          %v842 = vmul.f32 %v841, 0.6931472
          %v843 = vlog2.pop %v834
          %v844 = vmul.f32 %v843, 0.6931472
          %v845 = vlog2.pop %v835
          %v846 = vmul.f32 %v845, 0.6931472
          %v847 = vlog2.pop %v836
          %v848 = vmul.f32 %v847, 0.6931472
          %v849 = vlog2.pop %v837
          %v850 = vmul.f32 %v849, 0.6931472
          %v851 = vlog2.pop %v838
          %v852 = vmul.f32 %v851, 0.6931472
          %v853 = vlog2.pop %v839
          %v854 = vmul.f32 %v853, 0.6931472
          %v855 = vlog2.pop %v840
          %v856 = vmul.f32 %v855, 0.6931472
          %v857 = vld [vmem:[#allocation3] sm:$0xff]
          %v858 = vld [vmem:[#allocation3 + $0x8] sm:$0xff]
          %v859 = vld [vmem:[#allocation3 + $0x10] sm:$0xff]
          %v860 = vld [vmem:[#allocation3 + $0x18] sm:$0xff]
          %v861 = vld [vmem:[#allocation3 + $0x20] sm:$0xff]
          %v862 = vld [vmem:[#allocation3 + $0x28] sm:$0xff]
          %v863 = vld [vmem:[#allocation3 + $0x30] sm:$0xff]
          %v864 = vld [vmem:[#allocation3 + $0x38] sm:$0xff]
          %v865 = vsub.f32 %v857, 4.0
          %v866 = vsub.f32 %v858, 4.0
          %v867 = vsub.f32 %v859, 4.0
          %v868 = vsub.f32 %v860, 4.0
          %v869 = vsub.f32 %v861, 4.0
          %v870 = vsub.f32 %v862, 4.0
          %v871 = vsub.f32 %v863, 4.0
          %v872 = vsub.f32 %v864, 4.0
          %v873 = vld [vmem:[#allocation4] sm:$0xff]
          %v874 = vld [vmem:[#allocation4 + $0x8] sm:$0xff]
          %v875 = vld [vmem:[#allocation4 + $0x10] sm:$0xff]
          %v876 = vld [vmem:[#allocation4 + $0x18] sm:$0xff]
          %v877 = vld [vmem:[#allocation4 + $0x20] sm:$0xff]
          %v878 = vld [vmem:[#allocation4 + $0x28] sm:$0xff]
          %v879 = vld [vmem:[#allocation4 + $0x30] sm:$0xff]
          %v880 = vld [vmem:[#allocation4 + $0x38] sm:$0xff]
          %v881 = vsub.f32 %v873, 1.0
          %v882 = vsub.f32 %v874, 1.0
          %v883 = vsub.f32 %v875, 1.0
          %v884 = vsub.f32 %v876, 1.0
          %v885 = vsub.f32 %v877, 1.0
          %v886 = vsub.f32 %v878, 1.0
          %v887 = vsub.f32 %v879, 1.0
          %v888 = vsub.f32 %v880, 1.0
          %v889 = vmul.f32 %v842, %v881
          %v890 = vmul.f32 %v844, %v882
          %v891 = vmul.f32 %v846, %v883
          %v892 = vmul.f32 %v848, %v884
          %v893 = vmul.f32 %v850, %v885
          %v894 = vmul.f32 %v852, %v886
          %v895 = vmul.f32 %v854, %v887
          %v896 = vmul.f32 %v856, %v888
          %v897 = vsub.f32 %v865, %v889
          %v898 = vsub.f32 %v866, %v890
          %v899 = vsub.f32 %v867, %v891
          %v900 = vsub.f32 %v868, %v892
          %v901 = vsub.f32 %v869, %v893
          %v902 = vsub.f32 %v870, %v894
          %v903 = vsub.f32 %v871, %v895
          %v904 = vsub.f32 %v872, %v896
          %v905 = vmax.f32 %v825, 1.0
          %v906 = vmax.f32 %v826, 1.0
          %v907 = vmax.f32 %v827, 1.0
          %v908 = vmax.f32 %v828, 1.0
          %v909 = vmax.f32 %v829, 1.0
          %v910 = vmax.f32 %v830, 1.0
          %v911 = vmax.f32 %v831, 1.0
          %v912 = vmax.f32 %v832, 1.0
          %v913 = vrcp.pop %v905
          %v914 = vmul.f32 %v905, %v913
          %v915 = vsub.f32 1.0, %v914
          %v916 = vmul.f32 %v913, %v915
          %v917 = vadd.f32 %v913, %v916
          %vm918 = vweird.f32 %v905
          %vm919 = vweird.f32 %v913
          %vm920 = vmor %vm918, %vm919
          %v921 = vsel %vm920, %v913, %v917
          %v922 = vand.u32 2147483647, %v905
          %vm923 = vcmp.eq.f32.partialorder %v922, 8.507059e+37
          %v924 = vand.u32 %v905, 2147483648
          %v925 = vor.u32 1.1754944e-38, %v924
          %v926 = vsel %vm923, %v925, %v921
          %v927 = vmul.f32 %v897, %v926
          %v928 = vrcp.pop %v906
          %v929 = vmul.f32 %v906, %v928
          %v930 = vsub.f32 1.0, %v929
          %v931 = vmul.f32 %v928, %v930
          %v932 = vadd.f32 %v928, %v931
          %vm933 = vweird.f32 %v906
          %vm934 = vweird.f32 %v928
          %vm935 = vmor %vm933, %vm934
          %v936 = vsel %vm935, %v928, %v932
          %v937 = vand.u32 2147483647, %v906
          %vm938 = vcmp.eq.f32.partialorder %v937, 8.507059e+37
          %v939 = vand.u32 %v906, 2147483648
          %v940 = vor.u32 1.1754944e-38, %v939
          %v941 = vsel %vm938, %v940, %v936
          %v942 = vmul.f32 %v898, %v941
          %v943 = vrcp.pop %v907
          %v944 = vmul.f32 %v907, %v943
          %v945 = vsub.f32 1.0, %v944
          %v946 = vmul.f32 %v943, %v945
          %v947 = vadd.f32 %v943, %v946
          %vm948 = vweird.f32 %v907
          %vm949 = vweird.f32 %v943
          %vm950 = vmor %vm948, %vm949
          %v951 = vsel %vm950, %v943, %v947
          %v952 = vand.u32 2147483647, %v907
          %vm953 = vcmp.eq.f32.partialorder %v952, 8.507059e+37
          %v954 = vand.u32 %v907, 2147483648
          %v955 = vor.u32 1.1754944e-38, %v954
          %v956 = vsel %vm953, %v955, %v951
          %v957 = vmul.f32 %v899, %v956
          %v958 = vrcp.pop %v908
          %v959 = vmul.f32 %v908, %v958
          %v960 = vsub.f32 1.0, %v959
          %v961 = vmul.f32 %v958, %v960
          %v962 = vadd.f32 %v958, %v961
          %vm963 = vweird.f32 %v908
          %vm964 = vweird.f32 %v958
          %vm965 = vmor %vm963, %vm964
          %v966 = vsel %vm965, %v958, %v962
          %v967 = vand.u32 2147483647, %v908
          %vm968 = vcmp.eq.f32.partialorder %v967, 8.507059e+37
          %v969 = vand.u32 %v908, 2147483648
          %v970 = vor.u32 1.1754944e-38, %v969
          %v971 = vsel %vm968, %v970, %v966
          %v972 = vmul.f32 %v900, %v971
          %v973 = vrcp.pop %v909
          %v974 = vmul.f32 %v909, %v973
          %v975 = vsub.f32 1.0, %v974
          %v976 = vmul.f32 %v973, %v975
          %v977 = vadd.f32 %v973, %v976
          %vm978 = vweird.f32 %v909
          %vm979 = vweird.f32 %v973
          %vm980 = vmor %vm978, %vm979
          %v981 = vsel %vm980, %v973, %v977
          %v982 = vand.u32 2147483647, %v909
          %vm983 = vcmp.eq.f32.partialorder %v982, 8.507059e+37
          %v984 = vand.u32 %v909, 2147483648
          %v985 = vor.u32 1.1754944e-38, %v984
          %v986 = vsel %vm983, %v985, %v981
          %v987 = vmul.f32 %v901, %v986
          %v988 = vrcp.pop %v910
          %v989 = vmul.f32 %v910, %v988
          %v990 = vsub.f32 1.0, %v989
          %v991 = vmul.f32 %v988, %v990
          %v992 = vadd.f32 %v988, %v991
          %vm993 = vweird.f32 %v910
          %vm994 = vweird.f32 %v988
          %vm995 = vmor %vm993, %vm994
          %v996 = vsel %vm995, %v988, %v992
          %v997 = vand.u32 2147483647, %v910
          %vm998 = vcmp.eq.f32.partialorder %v997, 8.507059e+37
          %v999 = vand.u32 %v910, 2147483648
          %v1000 = vor.u32 1.1754944e-38, %v999
          %v1001 = vsel %vm998, %v1000, %v996
          %v1002 = vmul.f32 %v902, %v1001
          %v1003 = vrcp.pop %v911
          %v1004 = vmul.f32 %v911, %v1003
          %v1005 = vsub.f32 1.0, %v1004
          %v1006 = vmul.f32 %v1003, %v1005
          %v1007 = vadd.f32 %v1003, %v1006
          %vm1008 = vweird.f32 %v911
          %vm1009 = vweird.f32 %v1003
          %vm1010 = vmor %vm1008, %vm1009
          %v1011 = vsel %vm1010, %v1003, %v1007
          %v1012 = vand.u32 2147483647, %v911
          %vm1013 = vcmp.eq.f32.partialorder %v1012, 8.507059e+37
          %v1014 = vand.u32 %v911, 2147483648
          %v1015 = vor.u32 1.1754944e-38, %v1014
          %v1016 = vsel %vm1013, %v1015, %v1011
          %v1017 = vmul.f32 %v903, %v1016
          %v1018 = vrcp.pop %v912
          %v1019 = vmul.f32 %v912, %v1018
          %v1020 = vsub.f32 1.0, %v1019
          %v1021 = vmul.f32 %v1018, %v1020
          %v1022 = vadd.f32 %v1018, %v1021
          %vm1023 = vweird.f32 %v912
          %vm1024 = vweird.f32 %v1018
          %vm1025 = vmor %vm1023, %vm1024
          %v1026 = vsel %vm1025, %v1018, %v1022
          %v1027 = vand.u32 2147483647, %v912
          %vm1028 = vcmp.eq.f32.partialorder %v1027, 8.507059e+37
          %v1029 = vand.u32 %v912, 2147483648
          %v1030 = vor.u32 1.1754944e-38, %v1029
          %v1031 = vsel %vm1028, %v1030, %v1026
          %v1032 = vmul.f32 %v904, %v1031
          %v1033 = vsub.f32 0.0, %v927
          %v1034 = vsub.f32 0.0, %v942
          %v1035 = vsub.f32 0.0, %v957
          %v1036 = vsub.f32 0.0, %v972
          %v1037 = vsub.f32 0.0, %v987
          %v1038 = vsub.f32 0.0, %v1002
          %v1039 = vsub.f32 0.0, %v1017
          %v1040 = vsub.f32 0.0, %v1032
          %v1041 = vmul.f32 %v1033, 0.5
          %v1042 = vmul.f32 %v1034, 0.5
          %v1043 = vmul.f32 %v1035, 0.5
          %v1044 = vmul.f32 %v1036, 0.5
          %v1045 = vmul.f32 %v1037, 0.5
          %v1046 = vmul.f32 %v1038, 0.5
          %v1047 = vmul.f32 %v1039, 0.5
          %v1048 = vmul.f32 %v1040, 0.5
          %v1049 = vlaneseq
          %v1050 = vand.u32 %v1049, 127
          %vm1051 = vcmp.eq.s32.totalorder %v1050, 0
          %vm1052 = vcmp.eq.s32.totalorder %v1050, 1
          %1054 = vset.pattern.permute.xlu0 0
          %1055 = vperm.xlu0 %1054, %v825
          %v1056 = vpop.permute.xlu0 %1055
          %1059 = vset.pattern.permute.xlu0 0
          %1060 = vperm.xlu0 %1059, %v826
          %v1061 = vpop.permute.xlu0 %1060
          %1064 = vset.pattern.permute.xlu0 0
          %1065 = vperm.xlu0 %1064, %v827
          %v1066 = vpop.permute.xlu0 %1065
          %1069 = vset.pattern.permute.xlu0 0
          %1070 = vperm.xlu0 %1069, %v828
          %v1071 = vpop.permute.xlu0 %1070
          %1074 = vset.pattern.permute.xlu0 0
          %1075 = vperm.xlu0 %1074, %v829
          %v1076 = vpop.permute.xlu0 %1075
          %1079 = vset.pattern.permute.xlu0 0
          %1080 = vperm.xlu0 %1079, %v830
          %v1081 = vpop.permute.xlu0 %1080
          %1084 = vset.pattern.permute.xlu0 0
          %1085 = vperm.xlu0 %1084, %v831
          %v1086 = vpop.permute.xlu0 %1085
          %1089 = vset.pattern.permute.xlu0 0
          %1090 = vperm.xlu0 %1089, %v832
          %v1091 = vpop.permute.xlu0 %1090
          %v1093 = vsel %vm1052, %v1056, 0.0
          %v1094 = vsel %vm1052, %v1061, 0.0
          %v1095 = vsel %vm1052, %v1066, 0.0
          %v1096 = vsel %vm1052, %v1071, 0.0
          %v1097 = vsel %vm1052, %v1076, 0.0
          %v1098 = vsel %vm1052, %v1081, 0.0
          %v1099 = vsel %vm1052, %v1086, 0.0
          %v1100 = vsel %vm1052, %v1091, 0.0
          %1102 = vset.pattern.permute.xlu0 0
          %1103 = vperm.xlu0 %1102, %v1041
          %v1104 = vpop.permute.xlu0 %1103
          %1107 = vset.pattern.permute.xlu0 0
          %1108 = vperm.xlu0 %1107, %v1042
          %v1109 = vpop.permute.xlu0 %1108
          %1112 = vset.pattern.permute.xlu0 0
          %1113 = vperm.xlu0 %1112, %v1043
          %v1114 = vpop.permute.xlu0 %1113
          %1117 = vset.pattern.permute.xlu0 0
          %1118 = vperm.xlu0 %1117, %v1044
          %v1119 = vpop.permute.xlu0 %1118
          %1122 = vset.pattern.permute.xlu0 0
          %1123 = vperm.xlu0 %1122, %v1045
          %v1124 = vpop.permute.xlu0 %1123
          %1127 = vset.pattern.permute.xlu0 0
          %1128 = vperm.xlu0 %1127, %v1046
          %v1129 = vpop.permute.xlu0 %1128
          %1132 = vset.pattern.permute.xlu0 0
          %1133 = vperm.xlu0 %1132, %v1047
          %v1134 = vpop.permute.xlu0 %1133
          %1137 = vset.pattern.permute.xlu0 0
          %1138 = vperm.xlu0 %1137, %v1048
          %v1139 = vpop.permute.xlu0 %1138
          %v1141 = vsel %vm1051, %v1104, %v1093
          %v1142 = vsel %vm1051, %v1109, %v1094
          %v1143 = vsel %vm1051, %v1114, %v1095
          %v1144 = vsel %vm1051, %v1119, %v1096
          %v1145 = vsel %vm1051, %v1124, %v1097
          %v1146 = vsel %vm1051, %v1129, %v1098
          %v1147 = vsel %vm1051, %v1134, %v1099
          %v1148 = vsel %vm1051, %v1139, %v1100
          %1149 = vst [vmem:[%s338] sm:$0xff] %v1141
          %1150 = vst [vmem:[%s338 + $0x8] sm:$0xff] %v1142
          %1151 = vst [vmem:[%s338 + $0x10] sm:$0xff] %v1143
          %1152 = vst [vmem:[%s338 + $0x18] sm:$0xff] %v1144
          %1153 = vst [vmem:[%s338 + $0x20] sm:$0xff] %v1145
          %1154 = vst [vmem:[%s338 + $0x28] sm:$0xff] %v1146
          %1155 = vst [vmem:[%s338 + $0x30] sm:$0xff] %v1147
          %1156 = vst [vmem:[%s338 + $0x38] sm:$0xff] %v1148
        $region85: #{_supcon_forward.1} parent=72 // pred_fallthru
          _
        %s1157 = smul.u32 8, %s19
        %p1158 = scmp.lt.s32.totalorder %s1157, 31
        %s1159 = scalar_select %p1158, %s1157, 31
        %s1160 = smul.addr %s1159, 8
        %s1161 = scalar_lea.vmem %s4, %s1160
        // Predicated region
        $region86: #{_supcon_forward.1} parent=72 // pred_check
          %p1162 = pneg %p149
        $region87: #{_supcon_forward.1} parent=72 // pred_check_branch
          %1164 = sbr.rel (%p1162) target = $region89
        $region88: #{_supcon_forward.1} parent=72 // pred_region
          %s1165 = smul.u32 8, %s19
        $region89: #{_supcon_forward.1} parent=72 // pred_fallthru
          _
      $region73: #{_supcon_forward.1} parent=5 // pred_fallthru
        _
      %p1166 = scmp.le.s32.totalorder 2, %s10
      // Predicated region
      $region90: #{_supcon_forward.1} parent=5 // pred_check
        %p1167 = pneg %p1166
      $region91: #{_supcon_forward.1} parent=5 // pred_check_branch
        %1169 = sbr.rel (%p1167) target = $region93
      $region92: #{_supcon_forward.1} parent=5 // pred_region
        %s1170 = ssub.s32 %s10, 2
        // Predicated region
        $region94: #{_supcon_forward.1} parent=92 // pred_check
          %p1171 = pneg %p155
        $region95: #{_supcon_forward.1} parent=92 // pred_check_branch
          %1173 = sbr.rel (%p1171) target = $region97
        $region96: #{_supcon_forward.1} parent=92 // pred_region
          %s1174 = smul.u32 8, %s21
          %p1175 = scmp.lt.s32.totalorder %s1174, 31
          %s1176 = scalar_select %p1175, %s1174, 31
          %s1177 = smul.addr %s1176, 8
          %s1178 = scalar_lea.vmem %s4, %s1177
        $region97: #{_supcon_forward.1} parent=92 // pred_fallthru
          _
      $region93: #{_supcon_forward.1} parent=5 // pred_fallthru
        _
    $region6: #{_supcon_forward.1} parent=1 // loop_footer
      %s14 = sadd.s32 1, %s10
    $region7: #{_supcon_forward.1} parent=1 // loop_footer_branch
      %9 = sbr.rel target = $region3
    $region8: #{_supcon_forward.1} parent=1 // loop_exit
      _

</llo_original>
